<compile_context>
chip_gen: v7x
topology: tpu7x:2x2x1
jax: 0.10.0
libtpu: 0.0.40
codegen_flags: <defaults>
</compile_context>

<pallas_src>
import jax
import jax.numpy as jnp
from jax import lax
from jax.experimental import pallas as pl
from jax.experimental.pallas import tpu as pltpu

H = 128        # hidden size
I = 3          # input feature size
HEAD_N = 256   # fused head width: 128 (pitch) + 1 (step) + 1 (duration), padded to 256


def _round_up(n, m):
    return ((n + m - 1) // m) * m


def _cdiv(a, b):
    return -(-a // b)


def _chip_info():
    """Best-effort chip detection (perf knobs only; correctness does not depend on it)."""
    try:
        kind = jax.devices()[0].device_kind.lower()
    except Exception:
        kind = ""
    is_v5e = ("v5 lite" in kind) or ("v5e" in kind) or ("v5litepod" in kind)
    is_v7 = "v7" in kind
    try:
        vmem_cap = int(pltpu.get_tpu_info().vmem_capacity_bytes)
    except Exception:
        vmem_cap = (64 << 20) if is_v7 else (128 << 20)
    return is_v5e, is_v7, vmem_cap


def _make_kernel(T_total, TC, needs_mask, use_bf16_gates, unroll):
    """Build the LSTM+heads kernel with static chunking parameters closed over."""

    def kernel(preact_ref, whh_ref, wheads_ref, bheads_ref, out_ref, h_scr, c_scr):
        # Grid = (batch_tiles "parallel", t_chunks "arbitrary").
        # preact_ref : (TC, B_TILE, 4H) bf16  precomputed x_t @ W_ih^T + (b_ih + b_hh)
        # whh_ref    : (H, 4H)          bf16  recurrent weights (transposed)
        # wheads_ref : (H, HEAD_N)      bf16  [W_p | W_s | W_d | 0-pad]
        # bheads_ref : (1, HEAD_N)      f32
        # out_ref    : (B_TILE, HEAD_N) f32   cols [0:128]=pitch, 128=step, 129=duration
        # h_scr/c_scr: (B_TILE, H)      f32   recurrent state carried across t chunks
        t_blk = pl.program_id(1)

        @pl.when(t_blk == 0)
        def _init():
            h_scr[...] = jnp.zeros_like(h_scr)
            c_scr[...] = jnp.zeros_like(c_scr)

        whh = whh_ref[...]                      # (H, 4H) bf16, loaded once per chunk
        valid = T_total - t_blk * TC            # valid steps in this chunk (>= TC except last)

        def step_fn(t, carry):
            h, c = carry                        # (B_TILE, H) f32
            gates = (preact_ref[t].astype(jnp.float32)
                     + jnp.dot(h.astype(jnp.bfloat16), whh,
                               preferred_element_type=jnp.float32))    # (B_TILE, 4H) f32
            g = gates.astype(jnp.bfloat16) if use_bf16_gates else gates
            i_g = jax.nn.sigmoid(g[:, 0 * H:1 * H]).astype(jnp.float32)
            f_g = jax.nn.sigmoid(g[:, 1 * H:2 * H]).astype(jnp.float32)
            g_g = jnp.tanh(g[:, 2 * H:3 * H]).astype(jnp.float32)
            o_g = jax.nn.sigmoid(g[:, 3 * H:4 * H]).astype(jnp.float32)
            c_new = f_g * c + i_g * g_g                                 # f32 carry
            if use_bf16_gates:
                tanh_c = jnp.tanh(c_new.astype(jnp.bfloat16)).astype(jnp.float32)
            else:
                tanh_c = jnp.tanh(c_new)
            h_new = o_g * tanh_c
            if needs_mask:
                keep = t < valid
                h_new = jnp.where(keep, h_new, h)
                c_new = jnp.where(keep, c_new, c)
            return h_new, c_new

        h, c = lax.fori_loop(0, TC, step_fn, (h_scr[...], c_scr[...]), unroll=unroll)
        h_scr[...] = h
        c_scr[...] = c

        # Fused output heads on the final hidden state (single lane-dense bf16 matmul).
        @pl.when(t_blk == pl.num_programs(1) - 1)
        def _heads():
            heads = (jnp.dot(h.astype(jnp.bfloat16), wheads_ref[...],
                             preferred_element_type=jnp.float32)
                     + bheads_ref[...])                        # (B_TILE, HEAD_N) f32
            out_ref[:, :H] = jax.nn.sigmoid(heads[:, :H])      # pitch (sigmoid)
            out_ref[:, H:] = heads[:, H:]                      # step / duration / zero-pad

    return kernel


def my_model_forward(x, params):
    """x: (B, T, 3) float32, batch-first like the PyTorch module."""
    B, T, _ = x.shape
    is_v5e, is_v7, vmem_cap = _chip_info()

    # ---- batch tiling (pad to multiples of 16: safe sublane multiple for bf16 blocks)
    if B <= 128:
        if is_v7 and B >= 16:
            # v7x has 2 TensorCores: guarantee >=2 batch tiles so the "parallel"
            # batch axis uses both of them.
            B_pad = _round_up(B, 32)
            B_TILE = B_pad // 2
        else:
            B_pad = max(16, _round_up(B, 16))
            B_TILE = B_pad
    else:
        # Large batch: match the MXU row count (256 on v6e/v7x, 128 on v5e).
        tile = 256 if (not is_v5e and B >= 512) else 128
        B_pad = _round_up(B, tile)
        B_TILE = tile

    x_f = x.astype(jnp.float32)
    if B_pad != B:
        x_f = jnp.pad(x_f, ((0, B_pad - B), (0, 0), (0, 0)))

    # ---- hoisted input projection, time-major, streamed as bf16 ----------------
    # Transpose the tiny (B,T,3) input (essentially free) instead of the big output.
    x_tm = jnp.transpose(x_f, (1, 0, 2))                                # (T, B_pad, 3)
    preact = (x_tm @ params['wih_t'] + params['b']).astype(jnp.bfloat16)  # (T, B_pad, 4H)
    # NOTE: for very long sequences the projection could be done fully in-kernel from
    # the raw (TC, B_TILE, 3) x chunk to avoid the HBM round trip of preact entirely.

    # ---- T chunking: cdiv + masked tail, budget derived from this chip's VMEM ---
    bytes_per_step = B_TILE * 4 * H * 2          # bf16 preact row per timestep
    per_buf_budget = vmem_cap // 12              # ~10.6 MiB on 128 MiB parts, ~5.3 on v7x
    tc_budget = max(1, per_buf_budget // bytes_per_step)
    TC = max(1, min(tc_budget, (T + 1) // 2 if T > 1 else 1))
    grid_t = _cdiv(T, TC)
    T_pad = grid_t * TC
    needs_mask = (T_pad != T)
    if T_pad != T:
        preact = jnp.pad(preact, ((0, T_pad - T), (0, 0), (0, 0)))

    # ---- unroll tied to B_TILE (vreg pressure), not TC --------------------------
    if B_TILE <= 32:
        unroll = True if TC <= 32 else min(TC, 8)
    elif B_TILE <= 64:
        unroll = True if TC <= 8 else 4
    else:
        unroll = 2 if TC >= 2 else True

    # ---- gate math precision: bf16 EUP/VPU only on v6e/v7x and only when the
    #      transcendental work per step is large enough to matter -----------------
    use_bf16_gates = (not is_v5e) and (B_TILE >= 64)

    grid = (B_pad // B_TILE, grid_t)

    # ---- VMEM limit sized to the actual double-buffered footprint + margin ------
    block_bytes = (2 * TC * B_TILE * 4 * H * 2        # preact chunk (bf16), double-buffered
                   + 2 * H * 4 * H * 2                # whh (bf16)
                   + 2 * H * HEAD_N * 2               # fused head weights (bf16)
                   + 2 * 8 * HEAD_N * 4               # fused head bias (sublane-padded)
                   + 2 * B_TILE * HEAD_N * 4          # output block
                   + 2 * B_TILE * H * 4)              # h/c scratch
    vmem_limit = int(min(max(block_bytes + (8 << 20), 32 << 20), 0.75 * vmem_cap))

    kernel = _make_kernel(T, TC, needs_mask, use_bf16_gates, unroll)

    out = pl.pallas_call(
        kernel,
        out_shape=jax.ShapeDtypeStruct((B_pad, HEAD_N), jnp.float32),
        grid_spec=pltpu.PrefetchScalarGridSpec(
            num_scalar_prefetch=0,
            grid=grid,
            in_specs=[
                pl.BlockSpec((TC, B_TILE, 4 * H), lambda b, t: (t, b, 0)),
                pl.BlockSpec((H, 4 * H), lambda b, t: (0, 0)),
                pl.BlockSpec((H, HEAD_N), lambda b, t: (0, 0)),
                pl.BlockSpec((1, HEAD_N), lambda b, t: (0, 0)),
            ],
            out_specs=pl.BlockSpec((B_TILE, HEAD_N), lambda b, t: (b, 0)),
            scratch_shapes=[pltpu.VMEM((B_TILE, H), jnp.float32),
                            pltpu.VMEM((B_TILE, H), jnp.float32)],
        ),
        compiler_params=pltpu.CompilerParams(
            dimension_semantics=("parallel", "arbitrary"),
            vmem_limit_bytes=vmem_limit,
        ),
    )(preact, params['whh_bf16'], params['wheads_bf16'], params['bheads'])

    return {
        'pitch': out[:B, :H],
        'step': out[:B, H:H + 1],
        'duration': out[:B, H + 1:H + 2],
    }


def init_params(key):
    """Deterministic PyTorch-style init: U(-1/sqrt(H), 1/sqrt(H))."""
    k = 1.0 / jnp.sqrt(jnp.float32(H))
    keys = jax.random.split(key, 10)
    u = lambda kk, shape: jax.random.uniform(kk, shape, jnp.float32, -k, k)

    w_ih = u(keys[0], (4 * H, I))     # PyTorch weight_ih_l0
    w_hh = u(keys[1], (4 * H, H))     # PyTorch weight_hh_l0
    b_ih = u(keys[2], (4 * H,))
    b_hh = u(keys[3], (4 * H,))
    w_p = u(keys[4], (H, H))          # pitch_linear.weight
    b_p = u(keys[5], (H,))
    w_s = u(keys[6], (1, H))          # step_linear.weight
    b_s = u(keys[7], (1,))
    w_d = u(keys[8], (1, H))          # duration_linear.weight
    b_d = u(keys[9], (1,))

    wp_t, ws_t, wd_t = w_p.T, w_s.T, w_d.T          # (H,H), (H,1), (H,1)

    # Fused head weight/bias: cols [0:128]=pitch, 128=step, 129=duration, rest zero.
    wheads = jnp.zeros((H, HEAD_N), jnp.float32)
    wheads = wheads.at[:, :H].set(wp_t)
    wheads = wheads.at[:, H:H + 1].set(ws_t)
    wheads = wheads.at[:, H + 1:H + 2].set(wd_t)
    bheads = jnp.zeros((1, HEAD_N), jnp.float32)
    bheads = bheads.at[0, :H].set(b_p)
    bheads = bheads.at[0, H].set(b_s[0])
    bheads = bheads.at[0, H + 1].set(b_d[0])

    whh_t = w_hh.T                                   # (H, 4H)
    return {
        'wih_t': w_ih.T,                             # (I, 4H) f32
        'whh_t': whh_t,                              # (H, 4H) f32 (reference)
        'whh_bf16': whh_t.astype(jnp.bfloat16),      # (H, 4H) bf16 (kernel)
        'b': (b_ih + b_hh).reshape(1, 4 * H),        # (1, 4H) f32
        'wp_t': wp_t, 'bp': b_p.reshape(1, H),
        'ws_t': ws_t, 'bs': b_s.reshape(1, 1),
        'wd_t': wd_t, 'bd': b_d.reshape(1, 1),
        'wheads_bf16': wheads.astype(jnp.bfloat16),  # (H, HEAD_N) bf16 (kernel)
        'bheads': bheads,                            # (1, HEAD_N) f32
    }


def reference_forward(x, params):
    """Pure-JAX f32 reference replicating PyTorch semantics (for validation)."""
    B, T, _ = x.shape
    h = jnp.zeros((B, H), jnp.float32)
    c = jnp.zeros((B, H), jnp.float32)
    for t in range(T):
        gates = x[:, t, :] @ params['wih_t'] + h @ params['whh_t'] + params['b']
        i_g = jax.nn.sigmoid(gates[:, 0 * H:1 * H])
        f_g = jax.nn.sigmoid(gates[:, 1 * H:2 * H])
        g_g = jnp.tanh(gates[:, 2 * H:3 * H])
        o_g = jax.nn.sigmoid(gates[:, 3 * H:4 * H])
        c = f_g * c + i_g * g_g
        h = o_g * jnp.tanh(c)
    return {
        'pitch': jax.nn.sigmoid(h @ params['wp_t'] + params['bp']),
        'step': h @ params['ws_t'] + params['bs'],
        'duration': h @ params['wd_t'] + params['bd'],
    }


if __name__ == "__main__":
    key = jax.random.PRNGKey(0)
    k_param, k_x = jax.random.split(key)

    B, T = 2, 8
    x = jax.random.normal(k_x, (B, T, I), jnp.float32)
    params = init_params(k_param)

    fwd = jax.jit(my_model_forward)
    out = fwd(x, params)
    out = jax.tree_util.tree_map(jax.block_until_ready, out)

    ref = reference_forward(x, params)
    expected = {'pitch': (B, H), 'step': (B, 1), 'duration': (B, 1)}
    for name in ('pitch', 'step', 'duration'):
        assert out[name].shape == expected[name], (name, out[name].shape)
        # bf16 recurrent weights / bf16 streamed preact change numerics slightly
        # vs. the f32 reference.
        err = jnp.max(jnp.abs(out[name] - ref[name]))
        assert jnp.allclose(out[name], ref[name], atol=2.5e-2, rtol=2.5e-2), (name, err)

    print("KERNEL_OK")
</pallas_src>

<mosaic_0001>
module attributes {stable_mosaic.version = 11 : i64} {
  func.func @kernel(%arg0: i32, %arg1: i32, %arg2: memref<4x16x512xbf16, #tpu.memory_space<vmem>>, %arg3: memref<128x512xbf16, #tpu.memory_space<vmem>>, %arg4: memref<128x256xbf16, #tpu.memory_space<vmem>>, %arg5: memref<1x256xf32, #tpu.memory_space<vmem>>, %arg6: memref<16x256xf32, #tpu.memory_space<vmem>>, %arg7: memref<16x128xf32, #tpu.memory_space<vmem>>, %arg8: memref<16x128xf32, #tpu.memory_space<vmem>>) attributes {dimension_semantics = [#tpu.dimension_semantics<parallel>, #tpu.dimension_semantics<arbitrary>], iteration_bounds = array<i64: 1, 2>, scalar_prefetch = 0 : i64, scratch_operands = 2 : i64, tpu.core_type = #tpu.core_type<tc>, window_params = [{transform_indices = @transform_0, window_bounds = array<i64: 4, 16, 512>}, {pipeline_mode = #tpu.pipeline_mode<synchronous>, transform_indices = @transform_1, window_bounds = array<i64: 128, 512>}, {pipeline_mode = #tpu.pipeline_mode<synchronous>, transform_indices = @transform_2, window_bounds = array<i64: 128, 256>}, {pipeline_mode = #tpu.pipeline_mode<synchronous>, transform_indices = @transform_3, window_bounds = array<i64: 1, 256>}, {transform_indices = @transform_4, window_bounds = array<i64: 16, 256>}]} {
    %c0_i32 = arith.constant 0 : i32
    %0 = arith.cmpi eq, %arg1, %c0_i32 : i32
    %1 = arith.extui %0 : i1 to i32
    %c0_i32_0 = arith.constant 0 : i32
    %2 = arith.cmpi ne, %1, %c0_i32_0 : i32
    scf.if %2 {
      %cst_36 = arith.constant 0.000000e+00 : f32
      %139 = vector.broadcast %cst_36 : f32 to vector<16x128xf32>
      %c0_37 = arith.constant 0 : index
      %c0_38 = arith.constant 0 : index
      %140 = vector.load %arg7[%c0_37, %c0_38] : memref<16x128xf32, #tpu.memory_space<vmem>>, vector<16x128xf32>
      tpu.vector_store %arg7[%c0_37, %c0_38], %139 {strides = array<i32>} : memref<16x128xf32, #tpu.memory_space<vmem>>, vector<16x128xf32>,
      %cst_39 = arith.constant 0.000000e+00 : f32
      %141 = vector.broadcast %cst_39 : f32 to vector<16x128xf32>
      %c0_40 = arith.constant 0 : index
      %c0_41 = arith.constant 0 : index
      %142 = vector.load %arg8[%c0_40, %c0_41] : memref<16x128xf32, #tpu.memory_space<vmem>>, vector<16x128xf32>
      tpu.vector_store %arg8[%c0_40, %c0_41], %141 {strides = array<i32>} : memref<16x128xf32, #tpu.memory_space<vmem>>, vector<16x128xf32>,
    } else {
    }
    %c0 = arith.constant 0 : index
    %c0_1 = arith.constant 0 : index
    %3 = vector.load %arg3[%c0, %c0_1] : memref<128x512xbf16, #tpu.memory_space<vmem>>, vector<128x512xbf16>
    %c0_2 = arith.constant 0 : index
    %c0_3 = arith.constant 0 : index
    %4 = vector.load %arg7[%c0_2, %c0_3] : memref<16x128xf32, #tpu.memory_space<vmem>>, vector<16x128xf32>
    %c0_4 = arith.constant 0 : index
    %c0_5 = arith.constant 0 : index
    %5 = vector.load %arg8[%c0_4, %c0_5] : memref<16x128xf32, #tpu.memory_space<vmem>>, vector<16x128xf32>
    %c0_i32_6 = arith.constant 0 : i32
    %6 = arith.index_cast %c0_i32_6 : i32 to index
    %c0_7 = arith.constant 0 : index
    %c0_8 = arith.constant 0 : index
    %7 = vector.load %arg2[%6, %c0_7, %c0_8] : memref<4x16x512xbf16, #tpu.memory_space<vmem>>, vector<1x16x512xbf16>
    %8 = vector.shape_cast %7 : vector<1x16x512xbf16> to vector<16x512xbf16>
    %9 = arith.extf %8 : vector<16x512xbf16> to vector<16x512xf32>
    %10 = arith.truncf %4 : vector<16x128xf32> to vector<16x128xbf16>
    %cst = arith.constant dense<0.000000e+00> : vector<16x512xf32>
    %11 = tpu.matmul %10, %3, %cst {dimension_numbers = #tpu.dot_dimension_numbers<[1], [0], [0], [1], [0, 0, 1, 1], [], []>} : vector<16x128xbf16>, vector<128x512xbf16>, vector<16x512xf32> -> vector<16x512xf32>
    %12 = arith.addf %9, %11 : vector<16x512xf32>
    %13 = vector.extract_strided_slice %12 {offsets = [0, 0], sizes = [16, 128], strides = [1, 1]} : vector<16x512xf32> to vector<16x128xf32>
    %14 = arith.negf %13 : vector<16x128xf32>
    %15 = math.exp %14 : vector<16x128xf32>
    %cst_9 = arith.constant 1.000000e+00 : f32
    %16 = vector.broadcast %cst_9 : f32 to vector<16x128xf32>
    %17 = arith.addf %16, %15 : vector<16x128xf32>
    %18 = arith.divf %16, %17 : vector<16x128xf32>
    %19 = vector.extract_strided_slice %12 {offsets = [0, 128], sizes = [16, 128], strides = [1, 1]} : vector<16x512xf32> to vector<16x128xf32>
    %20 = arith.negf %19 : vector<16x128xf32>
    %21 = math.exp %20 : vector<16x128xf32>
    %cst_10 = arith.constant 1.000000e+00 : f32
    %22 = vector.broadcast %cst_10 : f32 to vector<16x128xf32>
    %23 = arith.addf %22, %21 : vector<16x128xf32>
    %24 = arith.divf %22, %23 : vector<16x128xf32>
    %25 = vector.extract_strided_slice %12 {offsets = [0, 256], sizes = [16, 128], strides = [1, 1]} : vector<16x512xf32> to vector<16x128xf32>
    %26 = math.tanh %25 : vector<16x128xf32>
    %27 = vector.extract_strided_slice %12 {offsets = [0, 384], sizes = [16, 128], strides = [1, 1]} : vector<16x512xf32> to vector<16x128xf32>
    %28 = arith.negf %27 : vector<16x128xf32>
    %29 = math.exp %28 : vector<16x128xf32>
    %cst_11 = arith.constant 1.000000e+00 : f32
    %30 = vector.broadcast %cst_11 : f32 to vector<16x128xf32>
    %31 = arith.addf %30, %29 : vector<16x128xf32>
    %32 = arith.divf %30, %31 : vector<16x128xf32>
    %33 = arith.mulf %24, %5 : vector<16x128xf32>
    %34 = arith.mulf %18, %26 : vector<16x128xf32>
    %35 = arith.addf %33, %34 : vector<16x128xf32>
    %36 = math.tanh %35 : vector<16x128xf32>
    %37 = arith.mulf %32, %36 : vector<16x128xf32>
    %c1_i32 = arith.constant 1 : i32
    %38 = arith.index_cast %c1_i32 : i32 to index
    %c0_12 = arith.constant 0 : index
    %c0_13 = arith.constant 0 : index
    %39 = vector.load %arg2[%38, %c0_12, %c0_13] : memref<4x16x512xbf16, #tpu.memory_space<vmem>>, vector<1x16x512xbf16>
    %40 = vector.shape_cast %39 : vector<1x16x512xbf16> to vector<16x512xbf16>
    %41 = arith.extf %40 : vector<16x512xbf16> to vector<16x512xf32>
    %42 = arith.truncf %37 : vector<16x128xf32> to vector<16x128xbf16>
    %cst_14 = arith.constant dense<0.000000e+00> : vector<16x512xf32>
    %43 = tpu.matmul %42, %3, %cst_14 {dimension_numbers = #tpu.dot_dimension_numbers<[1], [0], [0], [1], [0, 0, 1, 1], [], []>} : vector<16x128xbf16>, vector<128x512xbf16>, vector<16x512xf32> -> vector<16x512xf32>
    %44 = arith.addf %41, %43 : vector<16x512xf32>
    %45 = vector.extract_strided_slice %44 {offsets = [0, 0], sizes = [16, 128], strides = [1, 1]} : vector<16x512xf32> to vector<16x128xf32>
    %46 = arith.negf %45 : vector<16x128xf32>
    %47 = math.exp %46 : vector<16x128xf32>
    %cst_15 = arith.constant 1.000000e+00 : f32
    %48 = vector.broadcast %cst_15 : f32 to vector<16x128xf32>
    %49 = arith.addf %48, %47 : vector<16x128xf32>
    %50 = arith.divf %48, %49 : vector<16x128xf32>
    %51 = vector.extract_strided_slice %44 {offsets = [0, 128], sizes = [16, 128], strides = [1, 1]} : vector<16x512xf32> to vector<16x128xf32>
    %52 = arith.negf %51 : vector<16x128xf32>
    %53 = math.exp %52 : vector<16x128xf32>
    %cst_16 = arith.constant 1.000000e+00 : f32
    %54 = vector.broadcast %cst_16 : f32 to vector<16x128xf32>
    %55 = arith.addf %54, %53 : vector<16x128xf32>
    %56 = arith.divf %54, %55 : vector<16x128xf32>
    %57 = vector.extract_strided_slice %44 {offsets = [0, 256], sizes = [16, 128], strides = [1, 1]} : vector<16x512xf32> to vector<16x128xf32>
    %58 = math.tanh %57 : vector<16x128xf32>
    %59 = vector.extract_strided_slice %44 {offsets = [0, 384], sizes = [16, 128], strides = [1, 1]} : vector<16x512xf32> to vector<16x128xf32>
    %60 = arith.negf %59 : vector<16x128xf32>
    %61 = math.exp %60 : vector<16x128xf32>
    %cst_17 = arith.constant 1.000000e+00 : f32
    %62 = vector.broadcast %cst_17 : f32 to vector<16x128xf32>
    %63 = arith.addf %62, %61 : vector<16x128xf32>
    %64 = arith.divf %62, %63 : vector<16x128xf32>
    %65 = arith.mulf %56, %35 : vector<16x128xf32>
    %66 = arith.mulf %50, %58 : vector<16x128xf32>
    %67 = arith.addf %65, %66 : vector<16x128xf32>
    %68 = math.tanh %67 : vector<16x128xf32>
    %69 = arith.mulf %64, %68 : vector<16x128xf32>
    %c2_i32 = arith.constant 2 : i32
    %70 = arith.index_cast %c2_i32 : i32 to index
    %c0_18 = arith.constant 0 : index
    %c0_19 = arith.constant 0 : index
    %71 = vector.load %arg2[%70, %c0_18, %c0_19] : memref<4x16x512xbf16, #tpu.memory_space<vmem>>, vector<1x16x512xbf16>
    %72 = vector.shape_cast %71 : vector<1x16x512xbf16> to vector<16x512xbf16>
    %73 = arith.extf %72 : vector<16x512xbf16> to vector<16x512xf32>
    %74 = arith.truncf %69 : vector<16x128xf32> to vector<16x128xbf16>
    %cst_20 = arith.constant dense<0.000000e+00> : vector<16x512xf32>
    %75 = tpu.matmul %74, %3, %cst_20 {dimension_numbers = #tpu.dot_dimension_numbers<[1], [0], [0], [1], [0, 0, 1, 1], [], []>} : vector<16x128xbf16>, vector<128x512xbf16>, vector<16x512xf32> -> vector<16x512xf32>
    %76 = arith.addf %73, %75 : vector<16x512xf32>
    %77 = vector.extract_strided_slice %76 {offsets = [0, 0], sizes = [16, 128], strides = [1, 1]} : vector<16x512xf32> to vector<16x128xf32>
    %78 = arith.negf %77 : vector<16x128xf32>
    %79 = math.exp %78 : vector<16x128xf32>
    %cst_21 = arith.constant 1.000000e+00 : f32
    %80 = vector.broadcast %cst_21 : f32 to vector<16x128xf32>
    %81 = arith.addf %80, %79 : vector<16x128xf32>
    %82 = arith.divf %80, %81 : vector<16x128xf32>
    %83 = vector.extract_strided_slice %76 {offsets = [0, 128], sizes = [16, 128], strides = [1, 1]} : vector<16x512xf32> to vector<16x128xf32>
    %84 = arith.negf %83 : vector<16x128xf32>
    %85 = math.exp %84 : vector<16x128xf32>
    %cst_22 = arith.constant 1.000000e+00 : f32
    %86 = vector.broadcast %cst_22 : f32 to vector<16x128xf32>
    %87 = arith.addf %86, %85 : vector<16x128xf32>
    %88 = arith.divf %86, %87 : vector<16x128xf32>
    %89 = vector.extract_strided_slice %76 {offsets = [0, 256], sizes = [16, 128], strides = [1, 1]} : vector<16x512xf32> to vector<16x128xf32>
    %90 = math.tanh %89 : vector<16x128xf32>
    %91 = vector.extract_strided_slice %76 {offsets = [0, 384], sizes = [16, 128], strides = [1, 1]} : vector<16x512xf32> to vector<16x128xf32>
    %92 = arith.negf %91 : vector<16x128xf32>
    %93 = math.exp %92 : vector<16x128xf32>
    %cst_23 = arith.constant 1.000000e+00 : f32
    %94 = vector.broadcast %cst_23 : f32 to vector<16x128xf32>
    %95 = arith.addf %94, %93 : vector<16x128xf32>
    %96 = arith.divf %94, %95 : vector<16x128xf32>
    %97 = arith.mulf %88, %67 : vector<16x128xf32>
    %98 = arith.mulf %82, %90 : vector<16x128xf32>
    %99 = arith.addf %97, %98 : vector<16x128xf32>
    %100 = math.tanh %99 : vector<16x128xf32>
    %101 = arith.mulf %96, %100 : vector<16x128xf32>
    %c3_i32 = arith.constant 3 : i32
    %102 = arith.index_cast %c3_i32 : i32 to index
    %c0_24 = arith.constant 0 : index
    %c0_25 = arith.constant 0 : index
    %103 = vector.load %arg2[%102, %c0_24, %c0_25] : memref<4x16x512xbf16, #tpu.memory_space<vmem>>, vector<1x16x512xbf16>
    %104 = vector.shape_cast %103 : vector<1x16x512xbf16> to vector<16x512xbf16>
    %105 = arith.extf %104 : vector<16x512xbf16> to vector<16x512xf32>
    %106 = arith.truncf %101 : vector<16x128xf32> to vector<16x128xbf16>
    %cst_26 = arith.constant dense<0.000000e+00> : vector<16x512xf32>
    %107 = tpu.matmul %106, %3, %cst_26 {dimension_numbers = #tpu.dot_dimension_numbers<[1], [0], [0], [1], [0, 0, 1, 1], [], []>} : vector<16x128xbf16>, vector<128x512xbf16>, vector<16x512xf32> -> vector<16x512xf32>
    %108 = arith.addf %105, %107 : vector<16x512xf32>
    %109 = vector.extract_strided_slice %108 {offsets = [0, 0], sizes = [16, 128], strides = [1, 1]} : vector<16x512xf32> to vector<16x128xf32>
    %110 = arith.negf %109 : vector<16x128xf32>
    %111 = math.exp %110 : vector<16x128xf32>
    %cst_27 = arith.constant 1.000000e+00 : f32
    %112 = vector.broadcast %cst_27 : f32 to vector<16x128xf32>
    %113 = arith.addf %112, %111 : vector<16x128xf32>
    %114 = arith.divf %112, %113 : vector<16x128xf32>
    %115 = vector.extract_strided_slice %108 {offsets = [0, 128], sizes = [16, 128], strides = [1, 1]} : vector<16x512xf32> to vector<16x128xf32>
    %116 = arith.negf %115 : vector<16x128xf32>
    %117 = math.exp %116 : vector<16x128xf32>
    %cst_28 = arith.constant 1.000000e+00 : f32
    %118 = vector.broadcast %cst_28 : f32 to vector<16x128xf32>
    %119 = arith.addf %118, %117 : vector<16x128xf32>
    %120 = arith.divf %118, %119 : vector<16x128xf32>
    %121 = vector.extract_strided_slice %108 {offsets = [0, 256], sizes = [16, 128], strides = [1, 1]} : vector<16x512xf32> to vector<16x128xf32>
    %122 = math.tanh %121 : vector<16x128xf32>
    %123 = vector.extract_strided_slice %108 {offsets = [0, 384], sizes = [16, 128], strides = [1, 1]} : vector<16x512xf32> to vector<16x128xf32>
    %124 = arith.negf %123 : vector<16x128xf32>
    %125 = math.exp %124 : vector<16x128xf32>
    %cst_29 = arith.constant 1.000000e+00 : f32
    %126 = vector.broadcast %cst_29 : f32 to vector<16x128xf32>
    %127 = arith.addf %126, %125 : vector<16x128xf32>
    %128 = arith.divf %126, %127 : vector<16x128xf32>
    %129 = arith.mulf %120, %99 : vector<16x128xf32>
    %130 = arith.mulf %114, %122 : vector<16x128xf32>
    %131 = arith.addf %129, %130 : vector<16x128xf32>
    %132 = math.tanh %131 : vector<16x128xf32>
    %133 = arith.mulf %128, %132 : vector<16x128xf32>
    %c4_i32 = arith.constant 4 : i32
    %c0_30 = arith.constant 0 : index
    %c0_31 = arith.constant 0 : index
    %134 = vector.load %arg7[%c0_30, %c0_31] : memref<16x128xf32, #tpu.memory_space<vmem>>, vector<16x128xf32>
    tpu.vector_store %arg7[%c0_30, %c0_31], %133 {strides = array<i32>} : memref<16x128xf32, #tpu.memory_space<vmem>>, vector<16x128xf32>,
    %c0_32 = arith.constant 0 : index
    %c0_33 = arith.constant 0 : index
    %135 = vector.load %arg8[%c0_32, %c0_33] : memref<16x128xf32, #tpu.memory_space<vmem>>, vector<16x128xf32>
    tpu.vector_store %arg8[%c0_32, %c0_33], %131 {strides = array<i32>} : memref<16x128xf32, #tpu.memory_space<vmem>>, vector<16x128xf32>,
    %c1_i32_34 = arith.constant 1 : i32
    %136 = arith.cmpi eq, %arg1, %c1_i32_34 : i32
    %137 = arith.extui %136 : i1 to i32
    %c0_i32_35 = arith.constant 0 : i32
    %138 = arith.cmpi ne, %137, %c0_i32_35 : i32
    scf.if %138 {
      %139 = arith.truncf %133 : vector<16x128xf32> to vector<16x128xbf16>
      %c0_36 = arith.constant 0 : index
      %c0_37 = arith.constant 0 : index
      %140 = vector.load %arg4[%c0_36, %c0_37] : memref<128x256xbf16, #tpu.memory_space<vmem>>, vector<128x256xbf16>
      %cst_38 = arith.constant dense<0.000000e+00> : vector<16x256xf32>
      %141 = tpu.matmul %139, %140, %cst_38 {dimension_numbers = #tpu.dot_dimension_numbers<[1], [0], [0], [1], [0, 0, 1, 1], [], []>} : vector<16x128xbf16>, vector<128x256xbf16>, vector<16x256xf32> -> vector<16x256xf32>
      %c0_39 = arith.constant 0 : index
      %c0_40 = arith.constant 0 : index
      %142 = vector.load %arg5[%c0_39, %c0_40] : memref<1x256xf32, #tpu.memory_space<vmem>>, vector<1x256xf32>
      %143 = vector.broadcast %142 : vector<1x256xf32> to vector<16x256xf32>
      %144 = arith.addf %141, %143 : vector<16x256xf32>
      %145 = vector.extract_strided_slice %144 {offsets = [0, 0], sizes = [16, 128], strides = [1, 1]} : vector<16x256xf32> to vector<16x128xf32>
      %146 = arith.negf %145 : vector<16x128xf32>
      %147 = math.exp %146 : vector<16x128xf32>
      %cst_41 = arith.constant 1.000000e+00 : f32
      %148 = vector.broadcast %cst_41 : f32 to vector<16x128xf32>
      %149 = arith.addf %148, %147 : vector<16x128xf32>
      %150 = arith.divf %148, %149 : vector<16x128xf32>
      %c0_42 = arith.constant 0 : index
      %c0_43 = arith.constant 0 : index
      %151 = vector.load %arg6[%c0_42, %c0_43] : memref<16x256xf32, #tpu.memory_space<vmem>>, vector<16x128xf32>
      tpu.vector_store %arg6[%c0_42, %c0_43], %150 {strides = array<i32>} : memref<16x256xf32, #tpu.memory_space<vmem>>, vector<16x128xf32>,
      %152 = vector.extract_strided_slice %144 {offsets = [0, 128], sizes = [16, 128], strides = [1, 1]} : vector<16x256xf32> to vector<16x128xf32>
      %c0_44 = arith.constant 0 : index
      %c128 = arith.constant 128 : index
      %153 = vector.load %arg6[%c0_44, %c128] : memref<16x256xf32, #tpu.memory_space<vmem>>, vector<16x128xf32>
      tpu.vector_store %arg6[%c0_44, %c128], %152 {strides = array<i32>} : memref<16x256xf32, #tpu.memory_space<vmem>>, vector<16x128xf32>,
    } else {
    }
    return
  }
  func.func @transform_0(%arg0: i32, %arg1: i32) -> (i32, i32, i32) {
    %c0_i32 = arith.constant 0 : i32
    %c0_i32_0 = arith.constant 0 : i32
    return %arg1, %arg0, %c0_i32 : i32, i32, i32
  }
  func.func @transform_1(%arg0: i32, %arg1: i32) -> (i32, i32) {
    %c0_i32 = arith.constant 0 : i32
    %c0_i32_0 = arith.constant 0 : i32
    %c0_i32_1 = arith.constant 0 : i32
    return %c0_i32, %c0_i32_0 : i32, i32
  }
  func.func @transform_2(%arg0: i32, %arg1: i32) -> (i32, i32) {
    %c0_i32 = arith.constant 0 : i32
    %c0_i32_0 = arith.constant 0 : i32
    %c0_i32_1 = arith.constant 0 : i32
    return %c0_i32, %c0_i32_0 : i32, i32
  }
  func.func @transform_3(%arg0: i32, %arg1: i32) -> (i32, i32) {
    %c0_i32 = arith.constant 0 : i32
    %c0_i32_0 = arith.constant 0 : i32
    %c0_i32_1 = arith.constant 0 : i32
    return %c0_i32, %c0_i32_0 : i32, i32
  }
  func.func @transform_4(%arg0: i32, %arg1: i32) -> (i32, i32) {
    %c0_i32 = arith.constant 0 : i32
    %c0_i32_0 = arith.constant 0 : i32
    return %arg0, %c0_i32 : i32, i32
  }
}

</mosaic_0001>

<llo_original>
// kernel: my_model_forward.1
$region0: #{my_model_forward.1}
  #allocation0 [shape = 'u32[]', space=smem, size = 0x4, offset = 0x4, fixed_abs, tag = 'smem constant byte address 0x4 - core index']
  #allocation1 [shape = 'u32[144,128]{1,0:T(1,128)}', space=vmem, size = 0x12000, scoped, tag = 'internal scratch']
  #allocation2 [shape = 'f32[16,128]{1,0:T(8,128)}', space=vmem, size = 0x2000, scoped, tag = 'scratch operand']
  #allocation3 [shape = 'f32[16,128]{1,0:T(8,128)}', space=vmem, size = 0x2000, scoped, tag = 'scratch operand']
  %s0 = inlined_call_operand.vmem [shape: bf16[8,16,512], index: 0, kind: input, shape index: {}]
  %s1 = inlined_call_operand.vmem [shape: bf16[128,512], index: 1, kind: input, shape index: {}]
  %s2 = inlined_call_operand.hbm [shape: bf16[128,256], index: 2, kind: input, shape index: {}]
  %s3 = inlined_call_operand.vmem [shape: f32[1,256], index: 3, kind: input, shape index: {}]
  %s4 = inlined_call_operand.vmem [shape: f32[16,256], index: 4, kind: output, shape index: {}]
  %s5 = sld [smem:[#allocation0]]
  $region61: #{my_model_forward.1} parent=0
    _
  %s7 = ssub.s32 1, %s5
  %s8 = scalar_select 0, %s7, %s5
  $region1: #{my_model_forward.1} parent=0
    #allocation4 [shape = 'u8[65536]{0}', space=vmem, size = 0x10000, scoped, tag = 'input window, operand 2, single buffered']
    #allocation5 [shape = 's32[2]{0}', space=sflag, size = 0x8, scoped, tag = 'scoped memory for my_model_forward.1']
    %9 = vsyncpa [#allocation5], 0
    loop: start=0, step=1, limit=4
    $region2: #{my_model_forward.1} parent=1 // loop_pre_header
      _
    $region3: #{my_model_forward.1} parent=1 // loop_header
      %s11 = sphi 0, %s15
      %p12 = scmp.ge.s32.totalorder %s11, 4
      %s18 = sphi 0, %s30
      %s19 = sphi 0, %s26
      %s20 = sphi 0, %s18
      %s21 = sphi 0, %s19
      %s22 = sphi 0, %s20
      %s23 = sphi 0, %s21
      %s35 = sphi 0, %s37
      %s38 = sphi 0, %s35
      %s39 = sphi 0, %s38
      %s55 = sphi 0, %s39
      %s59 = sphi 0, %s59
      %s61 = sphi 0, %s59
      %s62 = sphi 0, %s61
      %s76 = sphi 0, %s62
      %s80 = sphi 0, %s80
      %s82 = sphi 0, %s80
      %s83 = sphi 0, %s82
      %s97 = sphi 0, %s83
      %s101 = sphi 0, %s101
      %s103 = sphi 0, %s101
      %s104 = sphi 0, %s103
      %s118 = sphi 0, %s104
      %s124 = sphi 0, %s126
      %s127 = sphi 0, %s124
      %s128 = sphi 0, %s127
      %s144 = sphi 0, %s128
    $region4: #{my_model_forward.1} parent=1 // loop_header_branch
      %14 = sbr.rel (%p12) target = $region8
    $region5: #{my_model_forward.1} parent=1 // loop_body
      %s16 = ssub.s32 %s11, 1
      %s17 = ssub.s32 %s11, 2
      %s24 = sadd.s32 1, %s19
      %p25 = scmp.ge.s32.totalorder %s24, 2
      %s26 = scalar_select %p25, 0, %s24
      %s27 = sadd.s32 1, %s18
      %s28 = scalar_select %p25, %s27, %s18
      %p29 = scmp.ge.s32.totalorder %s28, 1
      %s30 = scalar_select %p29, 0, %s28
      %s31 = ssub.s32 %s19, %s26
      %s32 = ssub.s32 %s18, %s30
      %s33 = sor.u32 %s31, %s32
      %p34 = scmp.eq.s32.totalorder %s33, 0
      %s36 = sadd.s32 %s35, 1
      %s37 = scalar_select %p34, %s35, %s36
      %p40 = pneg %p34
      %p41 = scmp.eq.s32.totalorder %s11, 1
      %p42 = por %p40, %p41
      %p43 = scmp.ne.s32.totalorder %s35, %s38
      %p44 = scmp.eq.s32.totalorder %s11, 0
      %p45 = por %p43, %p44
      %p46 = scmp.ne.s32.totalorder %s35, %s38
      %p47 = scmp.eq.s32.totalorder %s16, 1
      %p48 = por %p46, %p47
      %p49 = scmp.ne.s32.totalorder %s38, %s39
      %p50 = scmp.eq.s32.totalorder %s16, 0
      %p51 = por %p49, %p50
      %p52 = scmp.ne.s32.totalorder %s38, %s39
      %p53 = scmp.eq.s32.totalorder %s17, 1
      %p54 = por %p52, %p53
      %p56 = scmp.ne.s32.totalorder %s39, %s55
      %p57 = scmp.eq.s32.totalorder %s17, 0
      %p58 = por %p56, %p57
      %s60 = sadd.s32 %s59, 1
      %p63 = scmp.eq.s32.totalorder %s11, 1
      %p64 = scmp.ne.s32.totalorder %s59, %s61
      %p65 = scmp.eq.s32.totalorder %s11, 0
      %p66 = por %p64, %p65
      %p67 = scmp.ne.s32.totalorder %s59, %s61
      %p68 = scmp.eq.s32.totalorder %s16, 1
      %p69 = por %p67, %p68
      %p70 = scmp.ne.s32.totalorder %s61, %s62
      %p71 = scmp.eq.s32.totalorder %s16, 0
      %p72 = por %p70, %p71
      %p73 = scmp.ne.s32.totalorder %s61, %s62
      %p74 = scmp.eq.s32.totalorder %s17, 1
      %p75 = por %p73, %p74
      %p77 = scmp.ne.s32.totalorder %s62, %s76
      %p78 = scmp.eq.s32.totalorder %s17, 0
      %p79 = por %p77, %p78
      %s81 = sadd.s32 %s80, 1
      %p84 = scmp.eq.s32.totalorder %s11, 1
      %p85 = scmp.ne.s32.totalorder %s80, %s82
      %p86 = scmp.eq.s32.totalorder %s11, 0
      %p87 = por %p85, %p86
      %p88 = scmp.ne.s32.totalorder %s80, %s82
      %p89 = scmp.eq.s32.totalorder %s16, 1
      %p90 = por %p88, %p89
      %p91 = scmp.ne.s32.totalorder %s82, %s83
      %p92 = scmp.eq.s32.totalorder %s16, 0
      %p93 = por %p91, %p92
      %p94 = scmp.ne.s32.totalorder %s82, %s83
      %p95 = scmp.eq.s32.totalorder %s17, 1
      %p96 = por %p94, %p95
      %p98 = scmp.ne.s32.totalorder %s83, %s97
      %p99 = scmp.eq.s32.totalorder %s17, 0
      %p100 = por %p98, %p99
      %s102 = sadd.s32 %s101, 1
      %p105 = scmp.eq.s32.totalorder %s11, 1
      %p106 = scmp.ne.s32.totalorder %s101, %s103
      %p107 = scmp.eq.s32.totalorder %s11, 0
      %p108 = por %p106, %p107
      %p109 = scmp.ne.s32.totalorder %s101, %s103
      %p110 = scmp.eq.s32.totalorder %s16, 1
      %p111 = por %p109, %p110
      %p112 = scmp.ne.s32.totalorder %s103, %s104
      %p113 = scmp.eq.s32.totalorder %s16, 0
      %p114 = por %p112, %p113
      %p115 = scmp.ne.s32.totalorder %s103, %s104
      %p116 = scmp.eq.s32.totalorder %s17, 1
      %p117 = por %p115, %p116
      %p119 = scmp.ne.s32.totalorder %s104, %s118
      %p120 = scmp.eq.s32.totalorder %s17, 0
      %p121 = por %p119, %p120
      %s122 = ssub.s32 %s18, %s30
      %p123 = scmp.eq.s32.totalorder %s122, 0
      %s125 = sadd.s32 %s124, 1
      %s126 = scalar_select %p123, %s124, %s125
      %p129 = pneg %p123
      %p130 = scmp.eq.s32.totalorder %s11, 1
      %p131 = por %p129, %p130
      %p132 = scmp.ne.s32.totalorder %s124, %s127
      %p133 = scmp.eq.s32.totalorder %s11, 0
      %p134 = por %p132, %p133
      %p135 = scmp.ne.s32.totalorder %s124, %s127
      %p136 = scmp.eq.s32.totalorder %s16, 1
      %p137 = por %p135, %p136
      %p138 = scmp.ne.s32.totalorder %s127, %s128
      %p139 = scmp.eq.s32.totalorder %s16, 0
      %p140 = por %p138, %p139
      %p141 = scmp.ne.s32.totalorder %s127, %s128
      %p142 = scmp.eq.s32.totalorder %s17, 1
      %p143 = por %p141, %p142
      %p145 = scmp.ne.s32.totalorder %s128, %s144
      %p146 = scmp.eq.s32.totalorder %s17, 0
      %p147 = por %p145, %p146
      %p148 = scmp.le.s32.totalorder 1, %s11
      %p149 = scmp.lt.s32.totalorder %s11, 3
      %p150 = pnand %p148, %p149
      %p151 = pneg %p150
      // Predicated region
      $region9: #{my_model_forward.1} parent=5 // pred_check
        _
      $region10: #{my_model_forward.1} parent=5 // pred_check_branch
        %153 = sbr.rel (%p150) target = $region12
      $region11: #{my_model_forward.1} parent=5 // pred_region
        %s154 = ssub.s32 %s11, 1
        // Predicated region
        $region13: #{my_model_forward.1} parent=11 // pred_check
          %p155 = pneg %p72
        $region14: #{my_model_forward.1} parent=11 // pred_check_branch
          %157 = sbr.rel (%p155) target = $region16
        $region15: #{my_model_forward.1} parent=11 // pred_region
          _
        $region16: #{my_model_forward.1} parent=11 // pred_fallthru
          _
        // Predicated region
        $region17: #{my_model_forward.1} parent=11 // pred_check
          %p158 = pneg %p93
        $region18: #{my_model_forward.1} parent=11 // pred_check_branch
          %160 = sbr.rel (%p158) target = $region20
        $region19: #{my_model_forward.1} parent=11 // pred_region
          %s162 = ssub.s32 2048, 2048
          %163 = vsyncadd [#allocation5], %s162
          %s164 = sshll.u32 [#allocation4], 4
          %s165 = int_to_ptr.vmem [resolvable:$true] %s164
          %170 = dma.hbm_to_vmem [thread:$0]  %s2, 2048, %s165, [#allocation5], 128, 128, 8
        $region20: #{my_model_forward.1} parent=11 // pred_fallthru
          _
        // Predicated region
        $region21: #{my_model_forward.1} parent=11 // pred_check
          %p171 = pneg %p114
        $region22: #{my_model_forward.1} parent=11 // pred_check_branch
          %173 = sbr.rel (%p171) target = $region24
        $region23: #{my_model_forward.1} parent=11 // pred_region
          _
        $region24: #{my_model_forward.1} parent=11 // pred_fallthru
          _
      $region12: #{my_model_forward.1} parent=5 // pred_fallthru
        _
      %p174 = scmp.lt.s32.totalorder %s11, 2
      // Predicated region
      $region25: #{my_model_forward.1} parent=5 // pred_check
        %p175 = pneg %p174
      $region26: #{my_model_forward.1} parent=5 // pred_check_branch
        %177 = sbr.rel (%p175) target = $region28
      $region27: #{my_model_forward.1} parent=5 // pred_region
        // Predicated region
        $region29: #{my_model_forward.1} parent=27 // pred_check
          %p178 = pneg %p45
        $region30: #{my_model_forward.1} parent=27 // pred_check_branch
          %180 = sbr.rel (%p178) target = $region32
        $region31: #{my_model_forward.1} parent=27 // pred_region
          %s181 = smul.u32 4, %s19
          %s182 = smul.u32 2, %s18
          %p183 = scmp.lt.s32.totalorder %s181, 7
          %s184 = scalar_select %p183, %s181, 7
          %p185 = scmp.lt.s32.totalorder %s182, 1
          %s186 = scalar_select %p185, %s182, 1
          %s187 = smul.addr %s186, 4
          %s188 = smul.addr %s184, 8
          %s189 = sadd.s32 %s187, %s188
          %s190 = smul.addr %s189, 4
          %s191 = scalar_lea.vmem %s0, %s190
          %s192 = smul.u32 4, %s19
          %s193 = smul.u32 2, %s18
        $region32: #{my_model_forward.1} parent=27 // pred_fallthru
          _
      $region28: #{my_model_forward.1} parent=5 // pred_fallthru
        _
      %p194 = scmp.le.s32.totalorder 1, %s11
      %p195 = scmp.lt.s32.totalorder %s11, 3
      %p196 = pnand %p194, %p195
      %p197 = pneg %p196
      // Predicated region
      $region33: #{my_model_forward.1} parent=5 // pred_check
        _
      $region34: #{my_model_forward.1} parent=5 // pred_check_branch
        %199 = sbr.rel (%p196) target = $region36
      $region35: #{my_model_forward.1} parent=5 // pred_region
        %s200 = ssub.s32 %s11, 1
        // Predicated region
        $region37: #{my_model_forward.1} parent=35 // pred_check
          %p201 = pneg %p93
        $region38: #{my_model_forward.1} parent=35 // pred_check_branch
          %203 = sbr.rel (%p201) target = $region40
        $region39: #{my_model_forward.1} parent=35 // pred_region
          %204 = dma.done [#allocation5], 2048
        $region40: #{my_model_forward.1} parent=35 // pred_fallthru
          _
        %s205 = smul.u32 4, %s21
        %s206 = smul.u32 2, %s20
        %p207 = scmp.lt.s32.totalorder %s205, 7
        %s208 = scalar_select %p207, %s205, 7
        %p209 = scmp.lt.s32.totalorder %s206, 1
        %s210 = scalar_select %p209, %s206, 1
        %s211 = smul.addr %s210, 4
        %s212 = smul.addr %s208, 8
        %s213 = sadd.s32 %s211, %s212
        %s214 = smul.addr %s213, 4
        %s215 = scalar_lea.vmem %s0, %s214
        %p216 = pneg %p51
        %p217 = pneg %p48
        %p218 = pneg %p72
        %p219 = pneg %p69
        %p220 = pneg %p93
        %p221 = pneg %p90
        %p222 = pneg %p114
        %p223 = pneg %p111
        %p224 = pneg %p140
        %p225 = pneg %p137
        %s226 = smul.u32 2, %s20
        %p227 = scmp.lt.s32.totalorder %s226, 1
        %s228 = scalar_select %p227, %s226, 1
        %s229 = smul.addr %s228, 2
        %s230 = smul.addr %s229, 8
        %s231 = scalar_lea.vmem %s4, %s230
        %s232 = smul.u32 4, %s21
        %s233 = smul.u32 2, %s20
        %p234 = scmp.lt.s32.totalorder %s232, 7
        %s235 = scalar_select %p234, %s232, 7
        %p236 = scmp.lt.s32.totalorder %s233, 1
        %s237 = scalar_select %p236, %s233, 1
        %s238 = smul.addr %s237, 4
        %s239 = smul.addr %s235, 8
        %s240 = sadd.s32 %s238, %s239
        %s241 = smul.addr %s240, 4
        %s242 = scalar_lea.vmem %s0, %s241
        %s243 = smul.u32 4, %s21
        %s244 = smul.u32 2, %s20
        %s245 = smul.u32 2, %s20
        %p246 = scmp.lt.s32.totalorder %s245, 1
        %s247 = scalar_select %p246, %s245, 1
        %s248 = smul.addr %s247, 2
        %s249 = smul.addr %s248, 8
        %s250 = scalar_lea.vmem %s4, %s249
        %s251 = smul.u32 2, %s20
        %p253 = scmp.eq.s32.totalorder %s21, 0
        // Predicated region
        $region41: #{my_model_forward.1} parent=35 // pred_check
          %p254 = pneg %p253
        $region42: #{my_model_forward.1} parent=35 // pred_check_branch
          %256 = sbr.rel (%p254) target = $region44
        $region43: #{my_model_forward.1} parent=35 // pred_region
          %257 = vst [vmem:[#allocation2] sm:$0xff] 0.0
          %258 = vst [vmem:[#allocation2 + $0x8] sm:$0xff] 0.0
          %259 = vst [vmem:[#allocation3] sm:$0xff] 0.0
          %260 = vst [vmem:[#allocation3 + $0x8] sm:$0xff] 0.0
        $region44: #{my_model_forward.1} parent=35 // pred_fallthru
          _
        %v261 = vld [vmem:[%s1] sm:$0xff]
        %v262 = vld [vmem:[%s1 + $0x8] sm:$0xff]
        %v263 = vld [vmem:[%s1 + $0x10] sm:$0xff]
        %v264 = vld [vmem:[%s1 + $0x18] sm:$0xff]
        %v265 = vld [vmem:[%s1 + $0x20] sm:$0xff]
        %v266 = vld [vmem:[%s1 + $0x28] sm:$0xff]
        %v267 = vld [vmem:[%s1 + $0x30] sm:$0xff]
        %v268 = vld [vmem:[%s1 + $0x38] sm:$0xff]
        %v269 = vld [vmem:[%s1 + $0x40] sm:$0xff]
        %v270 = vld [vmem:[%s1 + $0x48] sm:$0xff]
        %v271 = vld [vmem:[%s1 + $0x50] sm:$0xff]
        %v272 = vld [vmem:[%s1 + $0x58] sm:$0xff]
        %v273 = vld [vmem:[%s1 + $0x60] sm:$0xff]
        %v274 = vld [vmem:[%s1 + $0x68] sm:$0xff]
        %v275 = vld [vmem:[%s1 + $0x70] sm:$0xff]
        %v276 = vld [vmem:[%s1 + $0x78] sm:$0xff]
        %v277 = vld [vmem:[%s1 + $0x80] sm:$0xff]
        %v278 = vld [vmem:[%s1 + $0x88] sm:$0xff]
        %v279 = vld [vmem:[%s1 + $0x90] sm:$0xff]
        %v280 = vld [vmem:[%s1 + $0x98] sm:$0xff]
        %v281 = vld [vmem:[%s1 + $0xa0] sm:$0xff]
        %v282 = vld [vmem:[%s1 + $0xa8] sm:$0xff]
        %v283 = vld [vmem:[%s1 + $0xb0] sm:$0xff]
        %v284 = vld [vmem:[%s1 + $0xb8] sm:$0xff]
        %v285 = vld [vmem:[%s1 + $0xc0] sm:$0xff]
        %v286 = vld [vmem:[%s1 + $0xc8] sm:$0xff]
        %v287 = vld [vmem:[%s1 + $0xd0] sm:$0xff]
        %v288 = vld [vmem:[%s1 + $0xd8] sm:$0xff]
        %v289 = vld [vmem:[%s1 + $0xe0] sm:$0xff]
        %v290 = vld [vmem:[%s1 + $0xe8] sm:$0xff]
        %v291 = vld [vmem:[%s1 + $0xf0] sm:$0xff]
        %v292 = vld [vmem:[%s1 + $0xf8] sm:$0xff]
        %v293 = vld [vmem:[#allocation2] sm:$0xff]
        %v294 = vld [vmem:[#allocation2 + $0x8] sm:$0xff]
        %v295 = vld [vmem:[#allocation3] sm:$0xff]
        %v296 = vld [vmem:[#allocation3 + $0x8] sm:$0xff]
        %v297 = vld [vmem:[%s242] sm:$0xff]
        %v298 = vld [vmem:[%s242 + $0x8] sm:$0xff]
        %v299 = vld [vmem:[%s242 + $0x10] sm:$0xff]
        %v300 = vld [vmem:[%s242 + $0x18] sm:$0xff]
        %v301 = vunpack.c.l.bf16 %v297
        %v302 = vunpack.c.h.bf16 %v297
        %v303 = vunpack.c.l.bf16 %v298
        %v304 = vunpack.c.h.bf16 %v298
        %v305 = vunpack.c.l.bf16 %v299
        %v306 = vunpack.c.h.bf16 %v299
        %v307 = vunpack.c.l.bf16 %v300
        %v308 = vunpack.c.h.bf16 %v300
        %v309 = vpack.c.bf16 %v294, %v293
        %v342 = vunpack.c.l.b16 %v261
        %v343 = vunpack.c.h.b16 %v261
        %v344 = vunpack.c.l.b16 %v262
        %v345 = vunpack.c.h.b16 %v262
        %v346 = vunpack.c.l.b16 %v263
        %v347 = vunpack.c.h.b16 %v263
        %v348 = vunpack.c.l.b16 %v264
        %v349 = vunpack.c.h.b16 %v264
        %v350 = vunpack.c.l.b16 %v265
        %v351 = vunpack.c.h.b16 %v265
        %v352 = vunpack.c.l.b16 %v266
        %v353 = vunpack.c.h.b16 %v266
        %v354 = vunpack.c.l.b16 %v267
        %v355 = vunpack.c.h.b16 %v267
        %v356 = vunpack.c.l.b16 %v268
        %v357 = vunpack.c.h.b16 %v268
        %v358 = vunpack.c.l.b16 %v269
        %v359 = vunpack.c.h.b16 %v269
        %v360 = vunpack.c.l.b16 %v270
        %v361 = vunpack.c.h.b16 %v270
        %v362 = vunpack.c.l.b16 %v271
        %v363 = vunpack.c.h.b16 %v271
        %v364 = vunpack.c.l.b16 %v272
        %v365 = vunpack.c.h.b16 %v272
        %v366 = vunpack.c.l.b16 %v273
        %v367 = vunpack.c.h.b16 %v273
        %v368 = vunpack.c.l.b16 %v274
        %v369 = vunpack.c.h.b16 %v274
        %v370 = vunpack.c.l.b16 %v275
        %v371 = vunpack.c.h.b16 %v275
        %v372 = vunpack.c.l.b16 %v276
        %v373 = vunpack.c.h.b16 %v276
        %v374 = vunpack.c.l.b16 %v277
        %v375 = vunpack.c.h.b16 %v277
        %v376 = vunpack.c.l.b16 %v278
        %v377 = vunpack.c.h.b16 %v278
        %v378 = vunpack.c.l.b16 %v279
        %v379 = vunpack.c.h.b16 %v279
        %v380 = vunpack.c.l.b16 %v280
        %v381 = vunpack.c.h.b16 %v280
        %v382 = vunpack.c.l.b16 %v281
        %v383 = vunpack.c.h.b16 %v281
        %v384 = vunpack.c.l.b16 %v282
        %v385 = vunpack.c.h.b16 %v282
        %v386 = vunpack.c.l.b16 %v283
        %v387 = vunpack.c.h.b16 %v283
        %v388 = vunpack.c.l.b16 %v284
        %v389 = vunpack.c.h.b16 %v284
        %v390 = vunpack.c.l.b16 %v285
        %v391 = vunpack.c.h.b16 %v285
        %v392 = vunpack.c.l.b16 %v286
        %v393 = vunpack.c.h.b16 %v286
        %v394 = vunpack.c.l.b16 %v287
        %v395 = vunpack.c.h.b16 %v287
        %v396 = vunpack.c.l.b16 %v288
        %v397 = vunpack.c.h.b16 %v288
        %v398 = vunpack.c.l.b16 %v289
        %v399 = vunpack.c.h.b16 %v289
        %v400 = vunpack.c.l.b16 %v290
        %v401 = vunpack.c.h.b16 %v290
        %v402 = vunpack.c.l.b16 %v291
        %v403 = vunpack.c.h.b16 %v291
        %v404 = vunpack.c.l.b16 %v292
        %v405 = vunpack.c.h.b16 %v292
        %v406 = vpack.c.b16 %v346, %v342
        %v407 = vpack.c.b16 %v347, %v343
        %v408 = vpack.c.b16 %v348, %v344
        %v409 = vpack.c.b16 %v349, %v345
        %v410 = vpack.c.b16 %v354, %v350
        %v411 = vpack.c.b16 %v355, %v351
        %v412 = vpack.c.b16 %v356, %v352
        %v413 = vpack.c.b16 %v357, %v353
        %v414 = vpack.c.b16 %v362, %v358
        %v415 = vpack.c.b16 %v363, %v359
        %v416 = vpack.c.b16 %v364, %v360
        %v417 = vpack.c.b16 %v365, %v361
        %v418 = vpack.c.b16 %v370, %v366
        %v419 = vpack.c.b16 %v371, %v367
        %v420 = vpack.c.b16 %v372, %v368
        %v421 = vpack.c.b16 %v373, %v369
        %v422 = vpack.c.b16 %v378, %v374
        %v423 = vpack.c.b16 %v379, %v375
        %v424 = vpack.c.b16 %v380, %v376
        %v425 = vpack.c.b16 %v381, %v377
        %v426 = vpack.c.b16 %v386, %v382
        %v427 = vpack.c.b16 %v387, %v383
        %v428 = vpack.c.b16 %v388, %v384
        %v429 = vpack.c.b16 %v389, %v385
        %v430 = vpack.c.b16 %v394, %v390
        %v431 = vpack.c.b16 %v395, %v391
        %v432 = vpack.c.b16 %v396, %v392
        %v433 = vpack.c.b16 %v397, %v393
        %v434 = vpack.c.b16 %v402, %v398
        %v435 = vpack.c.b16 %v403, %v399
        %v436 = vpack.c.b16 %v404, %v400
        %v437 = vpack.c.b16 %v405, %v401
        %470 = vmatprep.subr.bf16.mxu0 %v407
        %471 = vmatpush1.bf16.msra.mxu0 %v406
        %472 = vmatprep.subr.bf16.mxu0 %v411
        %473 = vmatpush1.bf16.msra.mxu0 %v410
        %474 = vmatprep.subr.bf16.mxu0 %v415
        %475 = vmatpush1.bf16.msra.mxu0 %v414
        %476 = vmatprep.subr.bf16.mxu0 %v419
        %477 = vmatpush1.bf16.msra.mxu0 %v418
        %478 = vmatprep.subr.bf16.mxu0 %v423
        %479 = vmatpush1.bf16.msra.mxu0 %v422
        %480 = vmatprep.subr.bf16.mxu0 %v427
        %481 = vmatpush1.bf16.msra.mxu0 %v426
        %482 = vmatprep.subr.bf16.mxu0 %v431
        %483 = vmatpush1.bf16.msra.mxu0 %v430
        %484 = vmatprep.subr.bf16.mxu0 %v435
        %485 = vmatpush1.bf16.msra.mxu0 %v434
        %486 = vmatprep.subr.bf16.mxu0 0
        %487 = vmatpush1.bf16.msra.mxu0 0
        %488 = vmatprep.subr.bf16.mxu0 0
        %489 = vmatpush1.bf16.msra.mxu0 0
        %490 = vmatprep.subr.bf16.mxu0 0
        %491 = vmatpush1.bf16.msra.mxu0 0
        %492 = vmatprep.subr.bf16.mxu0 0
        %493 = vmatpush1.bf16.msra.mxu0 0
        %494 = vmatprep.subr.bf16.mxu0 0
        %495 = vmatpush1.bf16.msra.mxu0 0
        %496 = vmatprep.subr.bf16.mxu0 0
        %497 = vmatpush1.bf16.msra.mxu0 0
        %498 = vmatprep.subr.bf16.mxu0 0
        %499 = vmatpush1.bf16.msra.mxu0 0
        %500 = vmatprep.subr.bf16.mxu0 0
        %501 = vmatpush1.bf16.msra.mxu0 0
        %502 = vmatprep.mubr.bf16.mxu0 0
        %503 = vmatmul.mubr.bf16.gmra.mrb[0].mxu0 %v309
        %v504 = vpop.f32.mrb[0].mxu0
        %v505 = vadd.f32 0.0, %v504
        %v506 = vpop.f32.mrb[0].mxu0
        %v507 = vadd.f32 0.0, %v506
        %v508 = vpop.f32.mrb[0].mxu0
        %v509 = vadd.f32 0.0, %v508
        %v510 = vpop.f32.mrb[0].mxu0
        %v511 = vadd.f32 0.0, %v510
        %512 = vdwg.mxu0
        %513 = vmatprep.subr.bf16.mxu0 %v409
        %514 = vmatpush1.bf16.msra.mxu0 %v408
        %515 = vmatprep.subr.bf16.mxu0 %v413
        %516 = vmatpush1.bf16.msra.mxu0 %v412
        %517 = vmatprep.subr.bf16.mxu0 %v417
        %518 = vmatpush1.bf16.msra.mxu0 %v416
        %519 = vmatprep.subr.bf16.mxu0 %v421
        %520 = vmatpush1.bf16.msra.mxu0 %v420
        %521 = vmatprep.subr.bf16.mxu0 %v425
        %522 = vmatpush1.bf16.msra.mxu0 %v424
        %523 = vmatprep.subr.bf16.mxu0 %v429
        %524 = vmatpush1.bf16.msra.mxu0 %v428
        %525 = vmatprep.subr.bf16.mxu0 %v433
        %526 = vmatpush1.bf16.msra.mxu0 %v432
        %527 = vmatprep.subr.bf16.mxu0 %v437
        %528 = vmatpush1.bf16.msra.mxu0 %v436
        %529 = vmatprep.subr.bf16.mxu0 0
        %530 = vmatpush1.bf16.msra.mxu0 0
        %531 = vmatprep.subr.bf16.mxu0 0
        %532 = vmatpush1.bf16.msra.mxu0 0
        %533 = vmatprep.subr.bf16.mxu0 0
        %534 = vmatpush1.bf16.msra.mxu0 0
        %535 = vmatprep.subr.bf16.mxu0 0
        %536 = vmatpush1.bf16.msra.mxu0 0
        %537 = vmatprep.subr.bf16.mxu0 0
        %538 = vmatpush1.bf16.msra.mxu0 0
        %539 = vmatprep.subr.bf16.mxu0 0
        %540 = vmatpush1.bf16.msra.mxu0 0
        %541 = vmatprep.subr.bf16.mxu0 0
        %542 = vmatpush1.bf16.msra.mxu0 0
        %543 = vmatprep.subr.bf16.mxu0 0
        %544 = vmatpush1.bf16.msra.mxu0 0
        %545 = vmatprep.mubr.bf16.mxu0 0
        %546 = vmatmul.mubr.bf16.gmra.mrb[0].mxu0 %v309
        %v547 = vpop.f32.mrb[0].mxu0
        %v548 = vadd.f32 0.0, %v547
        %v549 = vpop.f32.mrb[0].mxu0
        %v550 = vadd.f32 0.0, %v549
        %v551 = vpop.f32.mrb[0].mxu0
        %v552 = vadd.f32 0.0, %v551
        %v553 = vpop.f32.mrb[0].mxu0
        %v554 = vadd.f32 0.0, %v553
        %555 = vdwg.mxu0
        %v556 = vadd.f32 %v301, %v505
        %v557 = vadd.f32 %v302, %v507
        %v558 = vadd.f32 %v303, %v548
        %v559 = vadd.f32 %v304, %v550
        %v560 = vadd.f32 %v305, %v509
        %v561 = vadd.f32 %v306, %v511
        %v562 = vadd.f32 %v307, %v552
        %v563 = vadd.f32 %v308, %v554
        %v564 = vxor.u32 %v556, 2147483648
        %v565 = vxor.u32 %v560, 2147483648
        %v566 = vmul.f32 %v564, 1.442695
        %v567 = vpow.pop %v566
        %v568 = vmul.f32 %v565, 1.442695
        %v569 = vpow.pop %v568
        %v570 = vadd.f32 %v567, 1.0
        %v571 = vadd.f32 %v569, 1.0
        %v572 = vrcp.pop %v570
        %v573 = vmul.f32 1.0, %v572
        %v574 = vrcp.pop %v571
        %v575 = vmul.f32 1.0, %v574
        %v576 = vxor.u32 %v557, 2147483648
        %v577 = vxor.u32 %v561, 2147483648
        %v578 = vmul.f32 %v576, 1.442695
        %v579 = vpow.pop %v578
        %v580 = vmul.f32 %v577, 1.442695
        %v581 = vpow.pop %v580
        %v582 = vadd.f32 %v579, 1.0
        %v583 = vadd.f32 %v581, 1.0
        %v584 = vrcp.pop %v582
        %v585 = vmul.f32 1.0, %v584
        %v586 = vrcp.pop %v583
        %v587 = vmul.f32 1.0, %v586
        %v588 = vtanh.pop %v558
        %v589 = vtanh.pop %v562
        %v590 = vxor.u32 %v559, 2147483648
        %v591 = vxor.u32 %v563, 2147483648
        %v592 = vmul.f32 %v590, 1.442695
        %v593 = vpow.pop %v592
        %v594 = vmul.f32 %v591, 1.442695
        %v595 = vpow.pop %v594
        %v596 = vadd.f32 %v593, 1.0
        %v597 = vadd.f32 %v595, 1.0
        %v598 = vrcp.pop %v596
        %v599 = vmul.f32 1.0, %v598
        %v600 = vrcp.pop %v597
        %v601 = vmul.f32 1.0, %v600
        %v602 = vmul.f32 %v585, %v295
        %v603 = vmul.f32 %v587, %v296
        %v604 = vmul.f32 %v573, %v588
        %v605 = vmul.f32 %v575, %v589
        %v606 = vadd.f32 %v602, %v604
        %v607 = vadd.f32 %v603, %v605
        %v608 = vtanh.pop %v606
        %v609 = vtanh.pop %v607
        %v610 = vmul.f32 %v599, %v608
        %v611 = vmul.f32 %v601, %v609
        %s612 = scalar_lea.vmem %s242, 32
        %v613 = vld [vmem:[%s612] sm:$0xff]
        %v614 = vld [vmem:[%s612 + $0x8] sm:$0xff]
        %v615 = vld [vmem:[%s612 + $0x10] sm:$0xff]
        %v616 = vld [vmem:[%s612 + $0x18] sm:$0xff]
        %v617 = vunpack.c.l.bf16 %v613
        %v618 = vunpack.c.h.bf16 %v613
        %v619 = vunpack.c.l.bf16 %v614
        %v620 = vunpack.c.h.bf16 %v614
        %v621 = vunpack.c.l.bf16 %v615
        %v622 = vunpack.c.h.bf16 %v615
        %v623 = vunpack.c.l.bf16 %v616
        %v624 = vunpack.c.h.bf16 %v616
        %v625 = vpack.c.bf16 %v611, %v610
        %626 = vmatprep.subr.bf16.mxu0 %v407
        %627 = vmatpush1.bf16.msra.mxu0 %v406
        %628 = vmatprep.subr.bf16.mxu0 %v411
        %629 = vmatpush1.bf16.msra.mxu0 %v410
        %630 = vmatprep.subr.bf16.mxu0 %v415
        %631 = vmatpush1.bf16.msra.mxu0 %v414
        %632 = vmatprep.subr.bf16.mxu0 %v419
        %633 = vmatpush1.bf16.msra.mxu0 %v418
        %634 = vmatprep.subr.bf16.mxu0 %v423
        %635 = vmatpush1.bf16.msra.mxu0 %v422
        %636 = vmatprep.subr.bf16.mxu0 %v427
        %637 = vmatpush1.bf16.msra.mxu0 %v426
        %638 = vmatprep.subr.bf16.mxu0 %v431
        %639 = vmatpush1.bf16.msra.mxu0 %v430
        %640 = vmatprep.subr.bf16.mxu0 %v435
        %641 = vmatpush1.bf16.msra.mxu0 %v434
        %642 = vmatprep.subr.bf16.mxu0 0
        %643 = vmatpush1.bf16.msra.mxu0 0
        %644 = vmatprep.subr.bf16.mxu0 0
        %645 = vmatpush1.bf16.msra.mxu0 0
        %646 = vmatprep.subr.bf16.mxu0 0
        %647 = vmatpush1.bf16.msra.mxu0 0
        %648 = vmatprep.subr.bf16.mxu0 0
        %649 = vmatpush1.bf16.msra.mxu0 0
        %650 = vmatprep.subr.bf16.mxu0 0
        %651 = vmatpush1.bf16.msra.mxu0 0
        %652 = vmatprep.subr.bf16.mxu0 0
        %653 = vmatpush1.bf16.msra.mxu0 0
        %654 = vmatprep.subr.bf16.mxu0 0
        %655 = vmatpush1.bf16.msra.mxu0 0
        %656 = vmatprep.subr.bf16.mxu0 0
        %657 = vmatpush1.bf16.msra.mxu0 0
        %658 = vmatprep.mubr.bf16.mxu0 0
        %659 = vmatmul.mubr.bf16.gmra.mrb[0].mxu0 %v625
        %v660 = vpop.f32.mrb[0].mxu0
        %v661 = vadd.f32 0.0, %v660
        %v662 = vpop.f32.mrb[0].mxu0
        %v663 = vadd.f32 0.0, %v662
        %v664 = vpop.f32.mrb[0].mxu0
        %v665 = vadd.f32 0.0, %v664
        %v666 = vpop.f32.mrb[0].mxu0
        %v667 = vadd.f32 0.0, %v666
        %668 = vdwg.mxu0
        %669 = vmatprep.subr.bf16.mxu0 %v409
        %670 = vmatpush1.bf16.msra.mxu0 %v408
        %671 = vmatprep.subr.bf16.mxu0 %v413
        %672 = vmatpush1.bf16.msra.mxu0 %v412
        %673 = vmatprep.subr.bf16.mxu0 %v417
        %674 = vmatpush1.bf16.msra.mxu0 %v416
        %675 = vmatprep.subr.bf16.mxu0 %v421
        %676 = vmatpush1.bf16.msra.mxu0 %v420
        %677 = vmatprep.subr.bf16.mxu0 %v425
        %678 = vmatpush1.bf16.msra.mxu0 %v424
        %679 = vmatprep.subr.bf16.mxu0 %v429
        %680 = vmatpush1.bf16.msra.mxu0 %v428
        %681 = vmatprep.subr.bf16.mxu0 %v433
        %682 = vmatpush1.bf16.msra.mxu0 %v432
        %683 = vmatprep.subr.bf16.mxu0 %v437
        %684 = vmatpush1.bf16.msra.mxu0 %v436
        %685 = vmatprep.subr.bf16.mxu0 0
        %686 = vmatpush1.bf16.msra.mxu0 0
        %687 = vmatprep.subr.bf16.mxu0 0
        %688 = vmatpush1.bf16.msra.mxu0 0
        %689 = vmatprep.subr.bf16.mxu0 0
        %690 = vmatpush1.bf16.msra.mxu0 0
        %691 = vmatprep.subr.bf16.mxu0 0
        %692 = vmatpush1.bf16.msra.mxu0 0
        %693 = vmatprep.subr.bf16.mxu0 0
        %694 = vmatpush1.bf16.msra.mxu0 0
        %695 = vmatprep.subr.bf16.mxu0 0
        %696 = vmatpush1.bf16.msra.mxu0 0
        %697 = vmatprep.subr.bf16.mxu0 0
        %698 = vmatpush1.bf16.msra.mxu0 0
        %699 = vmatprep.subr.bf16.mxu0 0
        %700 = vmatpush1.bf16.msra.mxu0 0
        %701 = vmatprep.mubr.bf16.mxu0 0
        %702 = vmatmul.mubr.bf16.gmra.mrb[0].mxu0 %v625
        %v703 = vpop.f32.mrb[0].mxu0
        %v704 = vadd.f32 0.0, %v703
        %v705 = vpop.f32.mrb[0].mxu0
        %v706 = vadd.f32 0.0, %v705
        %v707 = vpop.f32.mrb[0].mxu0
        %v708 = vadd.f32 0.0, %v707
        %v709 = vpop.f32.mrb[0].mxu0
        %v710 = vadd.f32 0.0, %v709
        %711 = vdwg.mxu0
        %v712 = vadd.f32 %v617, %v661
        %v713 = vadd.f32 %v618, %v663
        %v714 = vadd.f32 %v619, %v704
        %v715 = vadd.f32 %v620, %v706
        %v716 = vadd.f32 %v621, %v665
        %v717 = vadd.f32 %v622, %v667
        %v718 = vadd.f32 %v623, %v708
        %v719 = vadd.f32 %v624, %v710
        %v720 = vxor.u32 %v712, 2147483648
        %v721 = vxor.u32 %v716, 2147483648
        %v722 = vmul.f32 %v720, 1.442695
        %v723 = vpow.pop %v722
        %v724 = vmul.f32 %v721, 1.442695
        %v725 = vpow.pop %v724
        %v726 = vadd.f32 %v723, 1.0
        %v727 = vadd.f32 %v725, 1.0
        %v728 = vrcp.pop %v726
        %v729 = vmul.f32 1.0, %v728
        %v730 = vrcp.pop %v727
        %v731 = vmul.f32 1.0, %v730
        %v732 = vxor.u32 %v713, 2147483648
        %v733 = vxor.u32 %v717, 2147483648
        %v734 = vmul.f32 %v732, 1.442695
        %v735 = vpow.pop %v734
        %v736 = vmul.f32 %v733, 1.442695
        %v737 = vpow.pop %v736
        %v738 = vadd.f32 %v735, 1.0
        %v739 = vadd.f32 %v737, 1.0
        %v740 = vrcp.pop %v738
        %v741 = vmul.f32 1.0, %v740
        %v742 = vrcp.pop %v739
        %v743 = vmul.f32 1.0, %v742
        %v744 = vtanh.pop %v714
        %v745 = vtanh.pop %v718
        %v746 = vxor.u32 %v715, 2147483648
        %v747 = vxor.u32 %v719, 2147483648
        %v748 = vmul.f32 %v746, 1.442695
        %v749 = vpow.pop %v748
        %v750 = vmul.f32 %v747, 1.442695
        %v751 = vpow.pop %v750
        %v752 = vadd.f32 %v749, 1.0
        %v753 = vadd.f32 %v751, 1.0
        %v754 = vrcp.pop %v752
        %v755 = vmul.f32 1.0, %v754
        %v756 = vrcp.pop %v753
        %v757 = vmul.f32 1.0, %v756
        %v758 = vmul.f32 %v741, %v606
        %v759 = vmul.f32 %v743, %v607
        %v760 = vmul.f32 %v729, %v744
        %v761 = vmul.f32 %v731, %v745
        %v762 = vadd.f32 %v758, %v760
        %v763 = vadd.f32 %v759, %v761
        %v764 = vtanh.pop %v762
        %v765 = vtanh.pop %v763
        %v766 = vmul.f32 %v755, %v764
        %v767 = vmul.f32 %v757, %v765
        %s768 = scalar_lea.vmem %s242, 64
        %v769 = vld [vmem:[%s768] sm:$0xff]
        %v770 = vld [vmem:[%s768 + $0x8] sm:$0xff]
        %v771 = vld [vmem:[%s768 + $0x10] sm:$0xff]
        %v772 = vld [vmem:[%s768 + $0x18] sm:$0xff]
        %v773 = vunpack.c.l.bf16 %v769
        %v774 = vunpack.c.h.bf16 %v769
        %v775 = vunpack.c.l.bf16 %v770
        %v776 = vunpack.c.h.bf16 %v770
        %v777 = vunpack.c.l.bf16 %v771
        %v778 = vunpack.c.h.bf16 %v771
        %v779 = vunpack.c.l.bf16 %v772
        %v780 = vunpack.c.h.bf16 %v772
        %v781 = vpack.c.bf16 %v767, %v766
        %782 = vmatprep.subr.bf16.mxu0 %v407
        %783 = vmatpush1.bf16.msra.mxu0 %v406
        %784 = vmatprep.subr.bf16.mxu0 %v411
        %785 = vmatpush1.bf16.msra.mxu0 %v410
        %786 = vmatprep.subr.bf16.mxu0 %v415
        %787 = vmatpush1.bf16.msra.mxu0 %v414
        %788 = vmatprep.subr.bf16.mxu0 %v419
        %789 = vmatpush1.bf16.msra.mxu0 %v418
        %790 = vmatprep.subr.bf16.mxu0 %v423
        %791 = vmatpush1.bf16.msra.mxu0 %v422
        %792 = vmatprep.subr.bf16.mxu0 %v427
        %793 = vmatpush1.bf16.msra.mxu0 %v426
        %794 = vmatprep.subr.bf16.mxu0 %v431
        %795 = vmatpush1.bf16.msra.mxu0 %v430
        %796 = vmatprep.subr.bf16.mxu0 %v435
        %797 = vmatpush1.bf16.msra.mxu0 %v434
        %798 = vmatprep.subr.bf16.mxu0 0
        %799 = vmatpush1.bf16.msra.mxu0 0
        %800 = vmatprep.subr.bf16.mxu0 0
        %801 = vmatpush1.bf16.msra.mxu0 0
        %802 = vmatprep.subr.bf16.mxu0 0
        %803 = vmatpush1.bf16.msra.mxu0 0
        %804 = vmatprep.subr.bf16.mxu0 0
        %805 = vmatpush1.bf16.msra.mxu0 0
        %806 = vmatprep.subr.bf16.mxu0 0
        %807 = vmatpush1.bf16.msra.mxu0 0
        %808 = vmatprep.subr.bf16.mxu0 0
        %809 = vmatpush1.bf16.msra.mxu0 0
        %810 = vmatprep.subr.bf16.mxu0 0
        %811 = vmatpush1.bf16.msra.mxu0 0
        %812 = vmatprep.subr.bf16.mxu0 0
        %813 = vmatpush1.bf16.msra.mxu0 0
        %814 = vmatprep.mubr.bf16.mxu0 0
        %815 = vmatmul.mubr.bf16.gmra.mrb[0].mxu0 %v781
        %v816 = vpop.f32.mrb[0].mxu0
        %v817 = vadd.f32 0.0, %v816
        %v818 = vpop.f32.mrb[0].mxu0
        %v819 = vadd.f32 0.0, %v818
        %v820 = vpop.f32.mrb[0].mxu0
        %v821 = vadd.f32 0.0, %v820
        %v822 = vpop.f32.mrb[0].mxu0
        %v823 = vadd.f32 0.0, %v822
        %824 = vdwg.mxu0
        %825 = vmatprep.subr.bf16.mxu0 %v409
        %826 = vmatpush1.bf16.msra.mxu0 %v408
        %827 = vmatprep.subr.bf16.mxu0 %v413
        %828 = vmatpush1.bf16.msra.mxu0 %v412
        %829 = vmatprep.subr.bf16.mxu0 %v417
        %830 = vmatpush1.bf16.msra.mxu0 %v416
        %831 = vmatprep.subr.bf16.mxu0 %v421
        %832 = vmatpush1.bf16.msra.mxu0 %v420
        %833 = vmatprep.subr.bf16.mxu0 %v425
        %834 = vmatpush1.bf16.msra.mxu0 %v424
        %835 = vmatprep.subr.bf16.mxu0 %v429
        %836 = vmatpush1.bf16.msra.mxu0 %v428
        %837 = vmatprep.subr.bf16.mxu0 %v433
        %838 = vmatpush1.bf16.msra.mxu0 %v432
        %839 = vmatprep.subr.bf16.mxu0 %v437
        %840 = vmatpush1.bf16.msra.mxu0 %v436
        %841 = vmatprep.subr.bf16.mxu0 0
        %842 = vmatpush1.bf16.msra.mxu0 0
        %843 = vmatprep.subr.bf16.mxu0 0
        %844 = vmatpush1.bf16.msra.mxu0 0
        %845 = vmatprep.subr.bf16.mxu0 0
        %846 = vmatpush1.bf16.msra.mxu0 0
        %847 = vmatprep.subr.bf16.mxu0 0
        %848 = vmatpush1.bf16.msra.mxu0 0
        %849 = vmatprep.subr.bf16.mxu0 0
        %850 = vmatpush1.bf16.msra.mxu0 0
        %851 = vmatprep.subr.bf16.mxu0 0
        %852 = vmatpush1.bf16.msra.mxu0 0
        %853 = vmatprep.subr.bf16.mxu0 0
        %854 = vmatpush1.bf16.msra.mxu0 0
        %855 = vmatprep.subr.bf16.mxu0 0
        %856 = vmatpush1.bf16.msra.mxu0 0
        %857 = vmatprep.mubr.bf16.mxu0 0
        %858 = vmatmul.mubr.bf16.gmra.mrb[0].mxu0 %v781
        %v859 = vpop.f32.mrb[0].mxu0
        %v860 = vadd.f32 0.0, %v859
        %v861 = vpop.f32.mrb[0].mxu0
        %v862 = vadd.f32 0.0, %v861
        %v863 = vpop.f32.mrb[0].mxu0
        %v864 = vadd.f32 0.0, %v863
        %v865 = vpop.f32.mrb[0].mxu0
        %v866 = vadd.f32 0.0, %v865
        %867 = vdwg.mxu0
        %v868 = vadd.f32 %v773, %v817
        %v869 = vadd.f32 %v774, %v819
        %v870 = vadd.f32 %v775, %v860
        %v871 = vadd.f32 %v776, %v862
        %v872 = vadd.f32 %v777, %v821
        %v873 = vadd.f32 %v778, %v823
        %v874 = vadd.f32 %v779, %v864
        %v875 = vadd.f32 %v780, %v866
        %v876 = vxor.u32 %v868, 2147483648
        %v877 = vxor.u32 %v872, 2147483648
        %v878 = vmul.f32 %v876, 1.442695
        %v879 = vpow.pop %v878
        %v880 = vmul.f32 %v877, 1.442695
        %v881 = vpow.pop %v880
        %v882 = vadd.f32 %v879, 1.0
        %v883 = vadd.f32 %v881, 1.0
        %v884 = vrcp.pop %v882
        %v885 = vmul.f32 1.0, %v884
        %v886 = vrcp.pop %v883
        %v887 = vmul.f32 1.0, %v886
        %v888 = vxor.u32 %v869, 2147483648
        %v889 = vxor.u32 %v873, 2147483648
        %v890 = vmul.f32 %v888, 1.442695
        %v891 = vpow.pop %v890
        %v892 = vmul.f32 %v889, 1.442695
        %v893 = vpow.pop %v892
        %v894 = vadd.f32 %v891, 1.0
        %v895 = vadd.f32 %v893, 1.0
        %v896 = vrcp.pop %v894
        %v897 = vmul.f32 1.0, %v896
        %v898 = vrcp.pop %v895
        %v899 = vmul.f32 1.0, %v898
        %v900 = vtanh.pop %v870
        %v901 = vtanh.pop %v874
        %v902 = vxor.u32 %v871, 2147483648
        %v903 = vxor.u32 %v875, 2147483648
        %v904 = vmul.f32 %v902, 1.442695
        %v905 = vpow.pop %v904
        %v906 = vmul.f32 %v903, 1.442695
        %v907 = vpow.pop %v906
        %v908 = vadd.f32 %v905, 1.0
        %v909 = vadd.f32 %v907, 1.0
        %v910 = vrcp.pop %v908
        %v911 = vmul.f32 1.0, %v910
        %v912 = vrcp.pop %v909
        %v913 = vmul.f32 1.0, %v912
        %v914 = vmul.f32 %v897, %v762
        %v915 = vmul.f32 %v899, %v763
        %v916 = vmul.f32 %v885, %v900
        %v917 = vmul.f32 %v887, %v901
        %v918 = vadd.f32 %v914, %v916
        %v919 = vadd.f32 %v915, %v917
        %v920 = vtanh.pop %v918
        %v921 = vtanh.pop %v919
        %v922 = vmul.f32 %v911, %v920
        %v923 = vmul.f32 %v913, %v921
        %s924 = scalar_lea.vmem %s242, 96
        %v925 = vld [vmem:[%s924] sm:$0xff]
        %v926 = vld [vmem:[%s924 + $0x8] sm:$0xff]
        %v927 = vld [vmem:[%s924 + $0x10] sm:$0xff]
        %v928 = vld [vmem:[%s924 + $0x18] sm:$0xff]
        %v929 = vunpack.c.l.bf16 %v925
        %v930 = vunpack.c.h.bf16 %v925
        %v931 = vunpack.c.l.bf16 %v926
        %v932 = vunpack.c.h.bf16 %v926
        %v933 = vunpack.c.l.bf16 %v927
        %v934 = vunpack.c.h.bf16 %v927
        %v935 = vunpack.c.l.bf16 %v928
        %v936 = vunpack.c.h.bf16 %v928
        %v937 = vpack.c.bf16 %v923, %v922
        %938 = vmatprep.subr.bf16.mxu0 %v407
        %939 = vmatpush1.bf16.msra.mxu0 %v406
        %940 = vmatprep.subr.bf16.mxu0 %v411
        %941 = vmatpush1.bf16.msra.mxu0 %v410
        %942 = vmatprep.subr.bf16.mxu0 %v415
        %943 = vmatpush1.bf16.msra.mxu0 %v414
        %944 = vmatprep.subr.bf16.mxu0 %v419
        %945 = vmatpush1.bf16.msra.mxu0 %v418
        %946 = vmatprep.subr.bf16.mxu0 %v423
        %947 = vmatpush1.bf16.msra.mxu0 %v422
        %948 = vmatprep.subr.bf16.mxu0 %v427
        %949 = vmatpush1.bf16.msra.mxu0 %v426
        %950 = vmatprep.subr.bf16.mxu0 %v431
        %951 = vmatpush1.bf16.msra.mxu0 %v430
        %952 = vmatprep.subr.bf16.mxu0 %v435
        %953 = vmatpush1.bf16.msra.mxu0 %v434
        %954 = vmatprep.subr.bf16.mxu0 0
        %955 = vmatpush1.bf16.msra.mxu0 0
        %956 = vmatprep.subr.bf16.mxu0 0
        %957 = vmatpush1.bf16.msra.mxu0 0
        %958 = vmatprep.subr.bf16.mxu0 0
        %959 = vmatpush1.bf16.msra.mxu0 0
        %960 = vmatprep.subr.bf16.mxu0 0
        %961 = vmatpush1.bf16.msra.mxu0 0
        %962 = vmatprep.subr.bf16.mxu0 0
        %963 = vmatpush1.bf16.msra.mxu0 0
        %964 = vmatprep.subr.bf16.mxu0 0
        %965 = vmatpush1.bf16.msra.mxu0 0
        %966 = vmatprep.subr.bf16.mxu0 0
        %967 = vmatpush1.bf16.msra.mxu0 0
        %968 = vmatprep.subr.bf16.mxu0 0
        %969 = vmatpush1.bf16.msra.mxu0 0
        %970 = vmatprep.mubr.bf16.mxu0 0
        %971 = vmatmul.mubr.bf16.gmra.mrb[0].mxu0 %v937
        %v972 = vpop.f32.mrb[0].mxu0
        %v973 = vadd.f32 0.0, %v972
        %v974 = vpop.f32.mrb[0].mxu0
        %v975 = vadd.f32 0.0, %v974
        %v976 = vpop.f32.mrb[0].mxu0
        %v977 = vadd.f32 0.0, %v976
        %v978 = vpop.f32.mrb[0].mxu0
        %v979 = vadd.f32 0.0, %v978
        %980 = vdwg.mxu0
        %981 = vmatprep.subr.bf16.mxu0 %v409
        %982 = vmatpush1.bf16.msra.mxu0 %v408
        %983 = vmatprep.subr.bf16.mxu0 %v413
        %984 = vmatpush1.bf16.msra.mxu0 %v412
        %985 = vmatprep.subr.bf16.mxu0 %v417
        %986 = vmatpush1.bf16.msra.mxu0 %v416
        %987 = vmatprep.subr.bf16.mxu0 %v421
        %988 = vmatpush1.bf16.msra.mxu0 %v420
        %989 = vmatprep.subr.bf16.mxu0 %v425
        %990 = vmatpush1.bf16.msra.mxu0 %v424
        %991 = vmatprep.subr.bf16.mxu0 %v429
        %992 = vmatpush1.bf16.msra.mxu0 %v428
        %993 = vmatprep.subr.bf16.mxu0 %v433
        %994 = vmatpush1.bf16.msra.mxu0 %v432
        %995 = vmatprep.subr.bf16.mxu0 %v437
        %996 = vmatpush1.bf16.msra.mxu0 %v436
        %997 = vmatprep.subr.bf16.mxu0 0
        %998 = vmatpush1.bf16.msra.mxu0 0
        %999 = vmatprep.subr.bf16.mxu0 0
        %1000 = vmatpush1.bf16.msra.mxu0 0
        %1001 = vmatprep.subr.bf16.mxu0 0
        %1002 = vmatpush1.bf16.msra.mxu0 0
        %1003 = vmatprep.subr.bf16.mxu0 0
        %1004 = vmatpush1.bf16.msra.mxu0 0
        %1005 = vmatprep.subr.bf16.mxu0 0
        %1006 = vmatpush1.bf16.msra.mxu0 0
        %1007 = vmatprep.subr.bf16.mxu0 0
        %1008 = vmatpush1.bf16.msra.mxu0 0
        %1009 = vmatprep.subr.bf16.mxu0 0
        %1010 = vmatpush1.bf16.msra.mxu0 0
        %1011 = vmatprep.subr.bf16.mxu0 0
        %1012 = vmatpush1.bf16.msra.mxu0 0
        %1013 = vmatprep.mubr.bf16.mxu0 0
        %1014 = vmatmul.mubr.bf16.gmra.mrb[0].mxu0 %v937
        %v1015 = vpop.f32.mrb[0].mxu0
        %v1016 = vadd.f32 0.0, %v1015
        %v1017 = vpop.f32.mrb[0].mxu0
        %v1018 = vadd.f32 0.0, %v1017
        %v1019 = vpop.f32.mrb[0].mxu0
        %v1020 = vadd.f32 0.0, %v1019
        %v1021 = vpop.f32.mrb[0].mxu0
        %v1022 = vadd.f32 0.0, %v1021
        %1023 = vdwg.mxu0
        %v1024 = vadd.f32 %v929, %v973
        %v1025 = vadd.f32 %v930, %v975
        %v1026 = vadd.f32 %v931, %v1016
        %v1027 = vadd.f32 %v932, %v1018
        %v1028 = vadd.f32 %v933, %v977
        %v1029 = vadd.f32 %v934, %v979
        %v1030 = vadd.f32 %v935, %v1020
        %v1031 = vadd.f32 %v936, %v1022
        %v1032 = vxor.u32 %v1024, 2147483648
        %v1033 = vxor.u32 %v1028, 2147483648
        %v1034 = vmul.f32 %v1032, 1.442695
        %v1035 = vpow.pop %v1034
        %v1036 = vmul.f32 %v1033, 1.442695
        %v1037 = vpow.pop %v1036
        %v1038 = vadd.f32 %v1035, 1.0
        %v1039 = vadd.f32 %v1037, 1.0
        %v1040 = vrcp.pop %v1038
        %v1041 = vmul.f32 1.0, %v1040
        %v1042 = vrcp.pop %v1039
        %v1043 = vmul.f32 1.0, %v1042
        %v1044 = vxor.u32 %v1025, 2147483648
        %v1045 = vxor.u32 %v1029, 2147483648
        %v1046 = vmul.f32 %v1044, 1.442695
        %v1047 = vpow.pop %v1046
        %v1048 = vmul.f32 %v1045, 1.442695
        %v1049 = vpow.pop %v1048
        %v1050 = vadd.f32 %v1047, 1.0
        %v1051 = vadd.f32 %v1049, 1.0
        %v1052 = vrcp.pop %v1050
        %v1053 = vmul.f32 1.0, %v1052
        %v1054 = vrcp.pop %v1051
        %v1055 = vmul.f32 1.0, %v1054
        %v1056 = vtanh.pop %v1026
        %v1057 = vtanh.pop %v1030
        %v1058 = vxor.u32 %v1027, 2147483648
        %v1059 = vxor.u32 %v1031, 2147483648
        %v1060 = vmul.f32 %v1058, 1.442695
        %v1061 = vpow.pop %v1060
        %v1062 = vmul.f32 %v1059, 1.442695
        %v1063 = vpow.pop %v1062
        %v1064 = vadd.f32 %v1061, 1.0
        %v1065 = vadd.f32 %v1063, 1.0
        %v1066 = vrcp.pop %v1064
        %v1067 = vmul.f32 1.0, %v1066
        %v1068 = vrcp.pop %v1065
        %v1069 = vmul.f32 1.0, %v1068
        %v1070 = vmul.f32 %v1053, %v918
        %v1071 = vmul.f32 %v1055, %v919
        %v1072 = vmul.f32 %v1041, %v1056
        %v1073 = vmul.f32 %v1043, %v1057
        %v1074 = vadd.f32 %v1070, %v1072
        %v1075 = vadd.f32 %v1071, %v1073
        %v1076 = vtanh.pop %v1074
        %v1077 = vtanh.pop %v1075
        %v1078 = vmul.f32 %v1067, %v1076
        %v1079 = vmul.f32 %v1069, %v1077
        %1080 = vst [vmem:[#allocation2] sm:$0xff] %v1078
        %1081 = vst [vmem:[#allocation2 + $0x8] sm:$0xff] %v1079
        %1082 = vst [vmem:[#allocation3] sm:$0xff] %v1074
        %1083 = vst [vmem:[#allocation3 + $0x8] sm:$0xff] %v1075
        %p1084 = scmp.eq.s32.totalorder %s21, 1
        // Predicated region
        $region45: #{my_model_forward.1} parent=35 // pred_check
          %p1085 = pneg %p1084
        $region46: #{my_model_forward.1} parent=35 // pred_check_branch
          %1087 = sbr.rel (%p1085) target = $region48
        $region47: #{my_model_forward.1} parent=35 // pred_region
          %v1088 = vpack.c.bf16 %v1079, %v1078
          %v1089 = vld [vmem:[#allocation4] sm:$0xff]
          %v1090 = vld [vmem:[#allocation4 + $0x8] sm:$0xff]
          %v1091 = vld [vmem:[#allocation4 + $0x10] sm:$0xff]
          %v1092 = vld [vmem:[#allocation4 + $0x18] sm:$0xff]
          %v1093 = vld [vmem:[#allocation4 + $0x20] sm:$0xff]
          %v1094 = vld [vmem:[#allocation4 + $0x28] sm:$0xff]
          %v1095 = vld [vmem:[#allocation4 + $0x30] sm:$0xff]
          %v1096 = vld [vmem:[#allocation4 + $0x38] sm:$0xff]
          %v1097 = vld [vmem:[#allocation4 + $0x40] sm:$0xff]
          %v1098 = vld [vmem:[#allocation4 + $0x48] sm:$0xff]
          %v1099 = vld [vmem:[#allocation4 + $0x50] sm:$0xff]
          %v1100 = vld [vmem:[#allocation4 + $0x58] sm:$0xff]
          %v1101 = vld [vmem:[#allocation4 + $0x60] sm:$0xff]
          %v1102 = vld [vmem:[#allocation4 + $0x68] sm:$0xff]
          %v1103 = vld [vmem:[#allocation4 + $0x70] sm:$0xff]
          %v1104 = vld [vmem:[#allocation4 + $0x78] sm:$0xff]
          %v1105 = vld [vmem:[%s3] sm:$0x3]
          %v1107 = vlaneseq
          %v1108 = vshrl.u32 %v1107, 7
          %v1109 = vsub.s32 0, %v1108
          %v1110 = vrot.slane %v1105, %v1109
          %v1111 = vlaneseq
          %v1112 = vshrl.u32 %v1111, 7
          %v1113 = vsub.s32 1, %v1112
          %v1114 = vrot.slane %v1105, %v1113
          %v1133 = vunpack.c.l.b16 %v1089
          %v1134 = vunpack.c.h.b16 %v1089
          %v1135 = vunpack.c.l.b16 %v1090
          %v1136 = vunpack.c.h.b16 %v1090
          %v1137 = vunpack.c.l.b16 %v1091
          %v1138 = vunpack.c.h.b16 %v1091
          %v1139 = vunpack.c.l.b16 %v1092
          %v1140 = vunpack.c.h.b16 %v1092
          %v1141 = vunpack.c.l.b16 %v1093
          %v1142 = vunpack.c.h.b16 %v1093
          %v1143 = vunpack.c.l.b16 %v1094
          %v1144 = vunpack.c.h.b16 %v1094
          %v1145 = vunpack.c.l.b16 %v1095
          %v1146 = vunpack.c.h.b16 %v1095
          %v1147 = vunpack.c.l.b16 %v1096
          %v1148 = vunpack.c.h.b16 %v1096
          %v1149 = vunpack.c.l.b16 %v1097
          %v1150 = vunpack.c.h.b16 %v1097
          %v1151 = vunpack.c.l.b16 %v1098
          %v1152 = vunpack.c.h.b16 %v1098
          %v1153 = vunpack.c.l.b16 %v1099
          %v1154 = vunpack.c.h.b16 %v1099
          %v1155 = vunpack.c.l.b16 %v1100
          %v1156 = vunpack.c.h.b16 %v1100
          %v1157 = vunpack.c.l.b16 %v1101
          %v1158 = vunpack.c.h.b16 %v1101
          %v1159 = vunpack.c.l.b16 %v1102
          %v1160 = vunpack.c.h.b16 %v1102
          %v1161 = vunpack.c.l.b16 %v1103
          %v1162 = vunpack.c.h.b16 %v1103
          %v1163 = vunpack.c.l.b16 %v1104
          %v1164 = vunpack.c.h.b16 %v1104
          %v1165 = vpack.c.b16 %v1135, %v1133
          %v1166 = vpack.c.b16 %v1136, %v1134
          %v1167 = vpack.c.b16 %v1139, %v1137
          %v1168 = vpack.c.b16 %v1140, %v1138
          %v1169 = vpack.c.b16 %v1143, %v1141
          %v1170 = vpack.c.b16 %v1144, %v1142
          %v1171 = vpack.c.b16 %v1147, %v1145
          %v1172 = vpack.c.b16 %v1148, %v1146
          %v1173 = vpack.c.b16 %v1151, %v1149
          %v1174 = vpack.c.b16 %v1152, %v1150
          %v1175 = vpack.c.b16 %v1155, %v1153
          %v1176 = vpack.c.b16 %v1156, %v1154
          %v1177 = vpack.c.b16 %v1159, %v1157
          %v1178 = vpack.c.b16 %v1160, %v1158
          %v1179 = vpack.c.b16 %v1163, %v1161
          %v1180 = vpack.c.b16 %v1164, %v1162
          %1197 = vmatprep.subr.bf16.mxu0 %v1166
          %1198 = vmatpush1.bf16.msra.mxu0 %v1165
          %1199 = vmatprep.subr.bf16.mxu0 %v1168
          %1200 = vmatpush1.bf16.msra.mxu0 %v1167
          %1201 = vmatprep.subr.bf16.mxu0 %v1170
          %1202 = vmatpush1.bf16.msra.mxu0 %v1169
          %1203 = vmatprep.subr.bf16.mxu0 %v1172
          %1204 = vmatpush1.bf16.msra.mxu0 %v1171
          %1205 = vmatprep.subr.bf16.mxu0 %v1174
          %1206 = vmatpush1.bf16.msra.mxu0 %v1173
          %1207 = vmatprep.subr.bf16.mxu0 %v1176
          %1208 = vmatpush1.bf16.msra.mxu0 %v1175
          %1209 = vmatprep.subr.bf16.mxu0 %v1178
          %1210 = vmatpush1.bf16.msra.mxu0 %v1177
          %1211 = vmatprep.subr.bf16.mxu0 %v1180
          %1212 = vmatpush1.bf16.msra.mxu0 %v1179
          %1213 = vmatprep.subr.bf16.mxu0 0
          %1214 = vmatpush1.bf16.msra.mxu0 0
          %1215 = vmatprep.subr.bf16.mxu0 0
          %1216 = vmatpush1.bf16.msra.mxu0 0
          %1217 = vmatprep.subr.bf16.mxu0 0
          %1218 = vmatpush1.bf16.msra.mxu0 0
          %1219 = vmatprep.subr.bf16.mxu0 0
          %1220 = vmatpush1.bf16.msra.mxu0 0
          %1221 = vmatprep.subr.bf16.mxu0 0
          %1222 = vmatpush1.bf16.msra.mxu0 0
          %1223 = vmatprep.subr.bf16.mxu0 0
          %1224 = vmatpush1.bf16.msra.mxu0 0
          %1225 = vmatprep.subr.bf16.mxu0 0
          %1226 = vmatpush1.bf16.msra.mxu0 0
          %1227 = vmatprep.subr.bf16.mxu0 0
          %1228 = vmatpush1.bf16.msra.mxu0 0
          %1229 = vmatprep.mubr.bf16.mxu0 0
          %1230 = vmatmul.mubr.bf16.gmra.mrb[0].mxu0 %v1088
          %v1231 = vpop.f32.mrb[0].mxu0
          %v1232 = vadd.f32 %v1110, %v1231
          %v1233 = vpop.f32.mrb[0].mxu0
          %v1234 = vadd.f32 %v1114, %v1233
          %v1235 = vpop.f32.mrb[0].mxu0
          %v1236 = vadd.f32 %v1110, %v1235
          %v1237 = vpop.f32.mrb[0].mxu0
          %v1238 = vadd.f32 %v1114, %v1237
          %1239 = vdwg.mxu0
          %v1240 = vxor.u32 %v1232, 2147483648
          %v1241 = vxor.u32 %v1236, 2147483648
          %v1242 = vmul.f32 %v1240, 1.442695
          %v1243 = vpow.pop %v1242
          %v1244 = vmul.f32 %v1241, 1.442695
          %v1245 = vpow.pop %v1244
          %v1246 = vadd.f32 %v1243, 1.0
          %v1247 = vadd.f32 %v1245, 1.0
          %v1248 = vrcp.pop %v1246
          %v1249 = vmul.f32 1.0, %v1248
          %v1250 = vrcp.pop %v1247
          %v1251 = vmul.f32 1.0, %v1250
          %1252 = vst [vmem:[%s250] sm:$0xff] %v1249
          %1253 = vst [vmem:[%s250 + $0x10] sm:$0xff] %v1251
          %1254 = vst [vmem:[%s250 + $0x8] sm:$0xff] %v1234
          %1255 = vst [vmem:[%s250 + $0x18] sm:$0xff] %v1238
        $region48: #{my_model_forward.1} parent=35 // pred_fallthru
          _
        %s1256 = smul.u32 2, %s20
        %p1257 = scmp.lt.s32.totalorder %s1256, 1
        %s1258 = scalar_select %p1257, %s1256, 1
        %s1259 = smul.addr %s1258, 2
        %s1260 = smul.addr %s1259, 8
        %s1261 = scalar_lea.vmem %s4, %s1260
        // Predicated region
        $region49: #{my_model_forward.1} parent=35 // pred_check
          %p1262 = pneg %p137
        $region50: #{my_model_forward.1} parent=35 // pred_check_branch
          %1264 = sbr.rel (%p1262) target = $region52
        $region51: #{my_model_forward.1} parent=35 // pred_region
          %s1265 = smul.u32 2, %s20
        $region52: #{my_model_forward.1} parent=35 // pred_fallthru
          _
        // Predicated region
        $region53: #{my_model_forward.1} parent=35 // pred_check
          %p1266 = pneg %p137
        $region54: #{my_model_forward.1} parent=35 // pred_check_branch
          %1268 = sbr.rel (%p1266) target = $region56
        $region55: #{my_model_forward.1} parent=35 // pred_region
          %s1269 = smul.u32 2, %s20
          %p1270 = scmp.lt.s32.totalorder %s1269, 1
          %s1271 = scalar_select %p1270, %s1269, 1
          %s1272 = smul.addr %s1271, 2
          %s1273 = smul.addr %s1272, 8
          %s1274 = scalar_lea.vmem %s4, %s1273
        $region56: #{my_model_forward.1} parent=35 // pred_fallthru
          _
      $region36: #{my_model_forward.1} parent=5 // pred_fallthru
        _
      %p1275 = scmp.le.s32.totalorder 2, %s11
      // Predicated region
      $region57: #{my_model_forward.1} parent=5 // pred_check
        %p1276 = pneg %p1275
      $region58: #{my_model_forward.1} parent=5 // pred_check_branch
        %1278 = sbr.rel (%p1276) target = $region60
      $region59: #{my_model_forward.1} parent=5 // pred_region
        %s1279 = ssub.s32 %s11, 2
      $region60: #{my_model_forward.1} parent=5 // pred_fallthru
        _
    $region6: #{my_model_forward.1} parent=1 // loop_footer
      %s15 = sadd.s32 1, %s11
    $region7: #{my_model_forward.1} parent=1 // loop_footer_branch
      %10 = sbr.rel target = $region3
    $region8: #{my_model_forward.1} parent=1 // loop_exit
      _
    %1280 = vsyncpa [#allocation5], 1
    %s1281 = scalar_lea.sflag [#allocation5], 1
    %1282 = vsyncpa %s1281, 1

</llo_original>
